<compile_context>
chip_gen: v7x
topology: tpu7x:2x2x1
jax: 0.10.0
libtpu: 0.0.40
codegen_flags: <defaults>
</compile_context>

<pallas_src>
import math
import functools

import numpy as np
import jax
import jax.numpy as jnp
from jax import lax
from jax.experimental import pallas as pl
from jax.experimental.pallas import tpu as pltpu


# ----------------------------------------------------------------------------
# Pallas kernel: one TransformerBlock forward over a (nb*S, Dp) row slab.
# ----------------------------------------------------------------------------
def transformer_block_kernel(
    x_ref, cos_ref, sin_ref, hm_ref, rot_ref,
    anw_ref, wq_ref, bq_ref, wk_ref, bk_ref, wv_ref, bv_ref,
    wout_ref, bout_ref,
    fnw_ref, w1a_ref, b1a_ref, w1b_ref, b1b_ref, w2_ref, b2_ref,
    o_ref,
    *, n_heads, seq_len, n_batch, d_model, eps,
):
    f32 = jnp.float32
    bf16 = jnp.bfloat16
    x = x_ref[...]                                   # (rows, Dp) f32, rows = nb*S
    rows, Dp = x.shape
    S, nb, H = seq_len, n_batch, n_heads

    def rmsnorm(v, w):
        # mean of squares over the TRUE model dim (padded lanes are zero).
        ms = jnp.sum(v * v, axis=-1, keepdims=True) * (1.0 / d_model)
        # rsqrt on the EUP; eps moves inside the root (negligible for eps=1e-8).
        return v * lax.rsqrt(ms + eps * eps) * w

    # ---- attention branch ----------------------------------------------------
    a = rmsnorm(x, anw_ref[...])
    ab = a.astype(bf16)
    # Wq / bq already carry the 1/sqrt(d_head) factor (folded in the wrapper).
    q = jnp.dot(ab, wq_ref[...], preferred_element_type=f32) + bq_ref[...]
    k = jnp.dot(ab, wk_ref[...], preferred_element_type=f32) + bk_ref[...]
    v = jnp.dot(ab, wv_ref[...], preferred_element_type=f32) + bv_ref[...]

    # Rotary: rotate-half per head == q @ R with a block-diagonal matrix (exact
    # in bf16, entries are 0/+-1); cos/sin are a shared (S, Dp) table broadcast
    # over the per-step batch dim.
    rot = rot_ref[...]
    qr = jnp.dot(q.astype(bf16), rot, preferred_element_type=f32)
    kr = jnp.dot(k.astype(bf16), rot, preferred_element_type=f32)
    cos = cos_ref[...][None]                          # (1, S, Dp)
    sin = sin_ref[...][None]
    q3 = q.reshape(nb, S, Dp) * cos + qr.reshape(nb, S, Dp) * sin
    k3 = k.reshape(nb, S, Dp) * cos + kr.reshape(nb, S, Dp) * sin
    v3 = v.reshape(nb, S, Dp)

    # Head-batched attention: mask q to each head's own columns and stack the
    # heads along the score sublane axis.  Mask is (H, Dp), broadcast here.
    # TODO(synk): replace with true per-head / flash-tiled attention once
    # d_head >= 128 (removes the H-times redundant MXU work + VPU recombine).
    hmb = jnp.broadcast_to(hm_ref[...][None, :, None, :], (nb, H, S, Dp))
    qbd = (q3[:, None, :, :] * hmb).reshape(nb, H * S, Dp)

    scores = jnp.einsum('bnd,btd->bnt', qbd.astype(bf16), k3.astype(bf16),
                        preferred_element_type=f32)   # (nb, H*S, S)
    m = jnp.max(scores, axis=-1, keepdims=True)
    p = jnp.exp(scores - m)
    p = p * pl.reciprocal(jnp.sum(p, axis=-1, keepdims=True), approx=True)

    ctx = jnp.einsum('bnt,btd->bnd', p.astype(bf16), v3.astype(bf16),
                     preferred_element_type=f32)      # (nb, H*S, Dp)
    # Re-combine heads: keep each head's own output columns and sum over h.
    attn = jnp.sum(ctx.reshape(nb, H, S, Dp) * hmb, axis=1).reshape(rows, Dp)

    x = x + jnp.dot(attn.astype(bf16), wout_ref[...],
                    preferred_element_type=f32) + bout_ref[...]

    # ---- feed-forward branch (SwiGLU) -----------------------------------------
    f = rmsnorm(x, fnw_ref[...])
    fb = f.astype(bf16)
    x1 = jnp.dot(fb, w1a_ref[...], preferred_element_type=f32) + b1a_ref[...]
    x2 = jnp.dot(fb, w1b_ref[...], preferred_element_type=f32) + b1b_ref[...]
    sig = pl.reciprocal(1.0 + jnp.exp(-x1), approx=True)          # silu via EUP
    g = (x1 * sig * x2).astype(bf16)
    x = x + jnp.dot(g, w2_ref[...], preferred_element_type=f32) + b2_ref[...]

    # dropout / layer_drop are identity in eval mode; attention mask is None.
    o_ref[...] = x.astype(o_ref.dtype)                # full-lane, unmasked store


# ----------------------------------------------------------------------------
# Wrapper
# ----------------------------------------------------------------------------
def _round_up(n, m):
    return ((n + m - 1) // m) * m


@functools.partial(jax.jit,
                   static_argnames=("n_heads", "ff_dim", "eps", "batches_per_step"))
def transformer_block(x, params, cos, sin, *, n_heads, ff_dim, eps=1e-8,
                      batches_per_step=None):
    B, S, D = x.shape
    assert D % n_heads == 0
    dh = D // n_heads
    # Reference apply_rotary only broadcasts correctly for d_head == 4.
    assert dh == 4, "reference apply_rotary requires d_head == 4"
    half = dh // 2
    scale = 1.0 / math.sqrt(dh)

    Dp = _round_up(D, 128)          # lane-dense model dim
    Fp = _round_up(ff_dim, 128)     # lane-dense FF dim

    # Default: >= 2 grid steps (when alignment allows) so v7x's 2 TensorCores
    # both get work; on 1-TC chips the extra step costs ~0.35us.
    if batches_per_step is None:
        batches_per_step = B
        if B % 2 == 0 and ((B // 2) * S) % 8 == 0:
            batches_per_step = B // 2
    assert B % batches_per_step == 0
    nb = batches_per_step
    n_steps = B // nb
    rows_step = nb * S
    assert n_steps == 1 or rows_step % 8 == 0, "row tile must be sublane-aligned"

    f32, bf16 = jnp.float32, jnp.bfloat16

    def pad2(a, r, c, dtype):
        a = jnp.asarray(a, f32)
        return jnp.pad(a, ((0, r - a.shape[0]), (0, c - a.shape[1]))).astype(dtype)

    # --- weight prep: (in, out) transposes, split qkv / w1, fold q scale,
    #     zero-pad to lane-dense shapes, store matmul weights in bf16 ----------
    wqkv, bqkv = params["wqkv"], params["bqkv"]
    wq = pad2(wqkv[:D].T * scale, Dp, Dp, bf16)
    wk = pad2(wqkv[D:2 * D].T, Dp, Dp, bf16)
    wv = pad2(wqkv[2 * D:].T, Dp, Dp, bf16)
    bq = pad2((bqkv[:D] * scale).reshape(1, D), 1, Dp, f32)
    bk = pad2(bqkv[D:2 * D].reshape(1, D), 1, Dp, f32)
    bv = pad2(bqkv[2 * D:].reshape(1, D), 1, Dp, f32)
    wout = pad2(params["wout"].T, Dp, Dp, bf16)
    bout = pad2(params["bout"].reshape(1, D), 1, Dp, f32)
    w1, b1 = params["w1"], params["b1"]
    w1a = pad2(w1[:ff_dim].T, Dp, Fp, bf16)
    w1b = pad2(w1[ff_dim:].T, Dp, Fp, bf16)
    b1a = pad2(b1[:ff_dim].reshape(1, ff_dim), 1, Fp, f32)
    b1b = pad2(b1[ff_dim:].reshape(1, ff_dim), 1, Fp, f32)
    w2 = pad2(params["w2"].T, Fp, Dp, bf16)
    b2 = pad2(params["b2"].reshape(1, D), 1, Dp, f32)
    anw = pad2(params["attn_norm_w"].reshape(1, D), 1, Dp, f32)
    fnw = pad2(params["ff_norm_w"].reshape(1, D), 1, Dp, f32)

    # --- shared lane-dense rotary tables (S, Dp): head-tiled, zero-padded ------
    cos_t = pad2(jnp.tile(cos, (1, n_heads)), S, Dp, f32)
    sin_t = pad2(jnp.tile(sin, (1, n_heads)), S, Dp, f32)

    # --- block-diagonal rotate-half (with sign) matrix, (Dp, Dp), bf16-exact ---
    R = np.zeros((Dp, Dp), np.float32)
    for h in range(n_heads):
        lo = h * dh
        for j in range(half):
            R[lo + half + j, lo + j] = 1.0      # q_rot[j]       =  q[half + j]
            R[lo + j, lo + half + j] = -1.0     # q_rot[half+j]  = -q[j]
    R = jnp.asarray(R, bf16)

    # --- head-column mask (H, Dp): hm[h, j] = 1 iff column j belongs to head h -
    col = np.arange(Dp)
    hm = ((col[None, :] // dh == np.arange(n_heads)[:, None]) & (col[None, :] < D))
    hm = jnp.asarray(hm.astype(np.float32))

    x_flat = jnp.pad(x.reshape(B * S, D), ((0, 0), (0, Dp - D)))

    row_spec = pl.BlockSpec((rows_step, Dp), lambda i: (i, 0))
    const = lambda shape: pl.BlockSpec(shape, lambda i: tuple(0 for _ in shape))

    in_specs = [
        row_spec,                                    # x (B*S, Dp), aliased to out
        const((S, Dp)), const((S, Dp)),              # cos, sin (shared table)
        const((n_heads, Dp)),                        # head-column mask
        const((Dp, Dp)),                             # rotate-half matrix
        const((1, Dp)),                              # attn_norm weight
        const((Dp, Dp)), const((1, Dp)),             # Wq^T (scaled), bq (scaled)
        const((Dp, Dp)), const((1, Dp)),             # Wk^T, bk
        const((Dp, Dp)), const((1, Dp)),             # Wv^T, bv
        const((Dp, Dp)), const((1, Dp)),             # Wout^T, bout
        const((1, Dp)),                              # ff_norm weight
        const((Dp, Fp)), const((1, Fp)),             # W1a^T, b1a
        const((Dp, Fp)), const((1, Fp)),             # W1b^T, b1b
        const((Fp, Dp)), const((1, Dp)),             # W2^T, b2
    ]

    kernel = functools.partial(
        transformer_block_kernel,
        n_heads=n_heads, seq_len=S, n_batch=nb, d_model=D, eps=eps)

    out_flat = pl.pallas_call(
        kernel,
        out_shape=jax.ShapeDtypeStruct((B * S, Dp), x.dtype),
        grid=(n_steps,),
        in_specs=in_specs,
        out_specs=pl.BlockSpec((rows_step, Dp), lambda i: (i, 0)),
        input_output_aliases={0: 0},                 # update residual slab in place
        compiler_params=pltpu.CompilerParams(
            dimension_semantics=("parallel",),
            vmem_limit_bytes=32 * 1024 * 1024),
    )(x_flat, cos_t, sin_t, hm, R,
      anw, wq, bq, wk, bk, wv, bv, wout, bout,
      fnw, w1a, b1a, w1b, b1b, w2, b2)

    return out_flat[:, :D].reshape(B, S, D)


# ----------------------------------------------------------------------------
# Rotary tables (glue, plain JAX) — same as RotaryEmbedding.forward
# ----------------------------------------------------------------------------
def rotary_tables(seq_len, dim, base=10000.0):
    inv_freq = 1.0 / (base ** (jnp.arange(0, dim, 2, dtype=jnp.float32) / dim))
    t = jnp.arange(seq_len, dtype=jnp.float32)
    freqs = jnp.einsum("i,j->ij", t, inv_freq)
    emb = jnp.concatenate([freqs, freqs], axis=-1)    # (S, dim)
    return jnp.cos(emb), jnp.sin(emb)


# ----------------------------------------------------------------------------
# Pure-JAX reference (literal translation of the PyTorch module, eval mode)
# ----------------------------------------------------------------------------
def apply_rotary_ref(q, k, cos, sin):
    q2 = jnp.stack([q[..., ::2], q[..., 1::2]], axis=-1)
    q_rot = jnp.concatenate([q2[..., 1, :], -q2[..., 0, :]], axis=-1)
    k2 = jnp.stack([k[..., ::2], k[..., 1::2]], axis=-1)
    k_rot = jnp.concatenate([k2[..., 1, :], -k2[..., 0, :]], axis=-1)
    return q * cos + q_rot * sin, k * cos + k_rot * sin


def transformer_block_ref(x, params, cos, sin, *, n_heads, eps=1e-8):
    B, S, D = x.shape
    dh = D // n_heads

    def rmsnorm(v, w):
        nrm = jnp.sqrt(jnp.sum(v * v, axis=-1, keepdims=True))
        return v / (nrm / math.sqrt(D) + eps) * w

    with jax.default_matmul_precision("float32"):
        a = rmsnorm(x, params["attn_norm_w"])
        qkv = a @ params["wqkv"].T + params["bqkv"]
        q, k, v = jnp.split(qkv, 3, axis=-1)
        q = q.reshape(B, S, n_heads, dh).transpose(0, 2, 1, 3)
        k = k.reshape(B, S, n_heads, dh).transpose(0, 2, 1, 3)
        v = v.reshape(B, S, n_heads, dh).transpose(0, 2, 1, 3)
        q, k = apply_rotary_ref(q, k, cos[None, :, :], sin[None, :, :])
        attn = (q @ jnp.swapaxes(k, -2, -1)) * (1.0 / math.sqrt(dh))
        attn = jax.nn.softmax(attn, axis=-1)
        out = attn @ v
        out = out.transpose(0, 2, 1, 3).reshape(B, S, D)
        x = x + out @ params["wout"].T + params["bout"]
        f = rmsnorm(x, params["ff_norm_w"])
        h = f @ params["w1"].T + params["b1"]
        x1, x2 = jnp.split(h, 2, axis=-1)
        x = x + (jax.nn.silu(x1) * x2) @ params["w2"].T + params["b2"]
    return x


# ----------------------------------------------------------------------------
if __name__ == "__main__":
    B, S, DIM, HEADS, FF = 2, 8, 32, 8, 64   # d_head = 4 (required by apply_rotary)
    assert DIM % HEADS == 0 and DIM // HEADS == 4

    key = jax.random.PRNGKey(0)
    ks = jax.random.split(key, 12)
    f32 = jnp.float32
    x = jax.random.normal(ks[0], (B, S, DIM), f32)

    params = {
        "attn_norm_w": 1.0 + 0.02 * jax.random.normal(ks[1], (DIM,), f32),
        "wqkv": 0.05 * jax.random.normal(ks[2], (3 * DIM, DIM), f32),
        "bqkv": 0.01 * jax.random.normal(ks[3], (3 * DIM,), f32),
        "wout": 0.05 * jax.random.normal(ks[4], (DIM, DIM), f32),
        "bout": 0.01 * jax.random.normal(ks[5], (DIM,), f32),
        "ff_norm_w": 1.0 + 0.02 * jax.random.normal(ks[6], (DIM,), f32),
        "w1": 0.05 * jax.random.normal(ks[7], (2 * FF, DIM), f32),
        "b1": 0.01 * jax.random.normal(ks[8], (2 * FF,), f32),
        "w2": 0.05 * jax.random.normal(ks[9], (DIM, FF), f32),
        "b2": 0.01 * jax.random.normal(ks[10], (DIM,), f32),
    }

    cos, sin = rotary_tables(S, DIM // HEADS)

    out = transformer_block(x, params, cos, sin, n_heads=HEADS, ff_dim=FF)
    out = jax.block_until_ready(out)

    ref = transformer_block_ref(x, params, cos, sin, n_heads=HEADS)
    assert out.shape == (B, S, DIM)
    # Tolerance accounts for bf16 MXU operands + approx (EUP) reciprocals vs the
    # all-f32 reference; residual stream itself stays f32 in the kernel.
    max_err = float(jnp.max(jnp.abs(out - ref)))
    if not bool(jnp.allclose(out, ref, atol=2e-2, rtol=2e-2)):
        raise AssertionError(f"Pallas output mismatch vs reference, max abs err={max_err}")

    print("KERNEL_OK")
</pallas_src>

<mosaic_0001>
module attributes {stable_mosaic.version = 11 : i64} {
  func.func @transformer_block_kernel(%arg0: i32, %arg1: memref<8x128xf32, #tpu.memory_space<vmem>>, %arg2: memref<8x128xf32, #tpu.memory_space<vmem>>, %arg3: memref<8x128xf32, #tpu.memory_space<vmem>>, %arg4: memref<8x128xf32, #tpu.memory_space<vmem>>, %arg5: memref<128x128xbf16, #tpu.memory_space<vmem>>, %arg6: memref<1x128xf32, #tpu.memory_space<vmem>>, %arg7: memref<128x128xbf16, #tpu.memory_space<vmem>>, %arg8: memref<1x128xf32, #tpu.memory_space<vmem>>, %arg9: memref<128x128xbf16, #tpu.memory_space<vmem>>, %arg10: memref<1x128xf32, #tpu.memory_space<vmem>>, %arg11: memref<128x128xbf16, #tpu.memory_space<vmem>>, %arg12: memref<1x128xf32, #tpu.memory_space<vmem>>, %arg13: memref<128x128xbf16, #tpu.memory_space<vmem>>, %arg14: memref<1x128xf32, #tpu.memory_space<vmem>>, %arg15: memref<1x128xf32, #tpu.memory_space<vmem>>, %arg16: memref<128x128xbf16, #tpu.memory_space<vmem>>, %arg17: memref<1x128xf32, #tpu.memory_space<vmem>>, %arg18: memref<128x128xbf16, #tpu.memory_space<vmem>>, %arg19: memref<1x128xf32, #tpu.memory_space<vmem>>, %arg20: memref<128x128xbf16, #tpu.memory_space<vmem>>, %arg21: memref<1x128xf32, #tpu.memory_space<vmem>>, %arg22: memref<8x128xf32, #tpu.memory_space<vmem>>) attributes {dimension_semantics = [#tpu.dimension_semantics<parallel>], iteration_bounds = array<i64: 2>, scalar_prefetch = 0 : i64, scratch_operands = 0 : i64, tpu.core_type = #tpu.core_type<tc>, window_params = [{transform_indices = @transform_0, window_bounds = array<i64: 8, 128>}, {pipeline_mode = #tpu.pipeline_mode<synchronous>, transform_indices = @transform_1, window_bounds = array<i64: 8, 128>}, {pipeline_mode = #tpu.pipeline_mode<synchronous>, transform_indices = @transform_2, window_bounds = array<i64: 8, 128>}, {pipeline_mode = #tpu.pipeline_mode<synchronous>, transform_indices = @transform_3, window_bounds = array<i64: 8, 128>}, {pipeline_mode = #tpu.pipeline_mode<synchronous>, transform_indices = @transform_4, window_bounds = array<i64: 128, 128>}, {pipeline_mode = #tpu.pipeline_mode<synchronous>, transform_indices = @transform_5, window_bounds = array<i64: 1, 128>}, {pipeline_mode = #tpu.pipeline_mode<synchronous>, transform_indices = @transform_6, window_bounds = array<i64: 128, 128>}, {pipeline_mode = #tpu.pipeline_mode<synchronous>, transform_indices = @transform_7, window_bounds = array<i64: 1, 128>}, {pipeline_mode = #tpu.pipeline_mode<synchronous>, transform_indices = @transform_8, window_bounds = array<i64: 128, 128>}, {pipeline_mode = #tpu.pipeline_mode<synchronous>, transform_indices = @transform_9, window_bounds = array<i64: 1, 128>}, {pipeline_mode = #tpu.pipeline_mode<synchronous>, transform_indices = @transform_10, window_bounds = array<i64: 128, 128>}, {pipeline_mode = #tpu.pipeline_mode<synchronous>, transform_indices = @transform_11, window_bounds = array<i64: 1, 128>}, {pipeline_mode = #tpu.pipeline_mode<synchronous>, transform_indices = @transform_12, window_bounds = array<i64: 128, 128>}, {pipeline_mode = #tpu.pipeline_mode<synchronous>, transform_indices = @transform_13, window_bounds = array<i64: 1, 128>}, {pipeline_mode = #tpu.pipeline_mode<synchronous>, transform_indices = @transform_14, window_bounds = array<i64: 1, 128>}, {pipeline_mode = #tpu.pipeline_mode<synchronous>, transform_indices = @transform_15, window_bounds = array<i64: 128, 128>}, {pipeline_mode = #tpu.pipeline_mode<synchronous>, transform_indices = @transform_16, window_bounds = array<i64: 1, 128>}, {pipeline_mode = #tpu.pipeline_mode<synchronous>, transform_indices = @transform_17, window_bounds = array<i64: 128, 128>}, {pipeline_mode = #tpu.pipeline_mode<synchronous>, transform_indices = @transform_18, window_bounds = array<i64: 1, 128>}, {pipeline_mode = #tpu.pipeline_mode<synchronous>, transform_indices = @transform_19, window_bounds = array<i64: 128, 128>}, {pipeline_mode = #tpu.pipeline_mode<synchronous>, transform_indices = @transform_20, window_bounds = array<i64: 1, 128>}, {transform_indices = @transform_21, window_bounds = array<i64: 8, 128>}]} {
    %c0 = arith.constant 0 : index
    %c0_0 = arith.constant 0 : index
    %0 = vector.load %arg1[%c0, %c0_0] : memref<8x128xf32, #tpu.memory_space<vmem>>, vector<8x128xf32>
    %c0_1 = arith.constant 0 : index
    %c0_2 = arith.constant 0 : index
    %1 = vector.load %arg6[%c0_1, %c0_2] : memref<1x128xf32, #tpu.memory_space<vmem>>, vector<1x128xf32>
    %2 = arith.mulf %0, %0 : vector<8x128xf32>
    %cst = arith.constant dense<0.000000e+00> : vector<8xf32>
    %3 = vector.multi_reduction <add>, %2, %cst [1] : vector<8x128xf32> to vector<8xf32>
    %4 = vector.shape_cast %3 : vector<8xf32> to vector<8x1xf32>
    %cst_3 = arith.constant 3.125000e-02 : f32
    %5 = vector.broadcast %cst_3 : f32 to vector<8x1xf32>
    %6 = arith.mulf %4, %5 : vector<8x1xf32>
    %cst_4 = arith.constant 1.000000e-16 : f32
    %7 = vector.broadcast %cst_4 : f32 to vector<8x1xf32>
    %8 = arith.addf %6, %7 : vector<8x1xf32>
    %9 = math.rsqrt %8 : vector<8x1xf32>
    %10 = vector.broadcast %9 : vector<8x1xf32> to vector<8x128xf32>
    %11 = arith.mulf %0, %10 : vector<8x128xf32>
    %12 = vector.broadcast %1 : vector<1x128xf32> to vector<8x128xf32>
    %13 = arith.mulf %11, %12 : vector<8x128xf32>
    %14 = arith.truncf %13 : vector<8x128xf32> to vector<8x128xbf16>
    %c0_5 = arith.constant 0 : index
    %c0_6 = arith.constant 0 : index
    %15 = vector.load %arg7[%c0_5, %c0_6] : memref<128x128xbf16, #tpu.memory_space<vmem>>, vector<128x128xbf16>
    %cst_7 = arith.constant dense<0.000000e+00> : vector<8x128xf32>
    %16 = tpu.matmul %14, %15, %cst_7 {dimension_numbers = #tpu.dot_dimension_numbers<[1], [0], [0], [1], [0, 0, 1, 1], [], []>} : vector<8x128xbf16>, vector<128x128xbf16>, vector<8x128xf32> -> vector<8x128xf32>
    %c0_8 = arith.constant 0 : index
    %c0_9 = arith.constant 0 : index
    %17 = vector.load %arg8[%c0_8, %c0_9] : memref<1x128xf32, #tpu.memory_space<vmem>>, vector<1x128xf32>
    %18 = vector.broadcast %17 : vector<1x128xf32> to vector<8x128xf32>
    %19 = arith.addf %16, %18 : vector<8x128xf32>
    %c0_10 = arith.constant 0 : index
    %c0_11 = arith.constant 0 : index
    %20 = vector.load %arg9[%c0_10, %c0_11] : memref<128x128xbf16, #tpu.memory_space<vmem>>, vector<128x128xbf16>
    %cst_12 = arith.constant dense<0.000000e+00> : vector<8x128xf32>
    %21 = tpu.matmul %14, %20, %cst_12 {dimension_numbers = #tpu.dot_dimension_numbers<[1], [0], [0], [1], [0, 0, 1, 1], [], []>} : vector<8x128xbf16>, vector<128x128xbf16>, vector<8x128xf32> -> vector<8x128xf32>
    %c0_13 = arith.constant 0 : index
    %c0_14 = arith.constant 0 : index
    %22 = vector.load %arg10[%c0_13, %c0_14] : memref<1x128xf32, #tpu.memory_space<vmem>>, vector<1x128xf32>
    %23 = vector.broadcast %22 : vector<1x128xf32> to vector<8x128xf32>
    %24 = arith.addf %21, %23 : vector<8x128xf32>
    %c0_15 = arith.constant 0 : index
    %c0_16 = arith.constant 0 : index
    %25 = vector.load %arg11[%c0_15, %c0_16] : memref<128x128xbf16, #tpu.memory_space<vmem>>, vector<128x128xbf16>
    %cst_17 = arith.constant dense<0.000000e+00> : vector<8x128xf32>
    %26 = tpu.matmul %14, %25, %cst_17 {dimension_numbers = #tpu.dot_dimension_numbers<[1], [0], [0], [1], [0, 0, 1, 1], [], []>} : vector<8x128xbf16>, vector<128x128xbf16>, vector<8x128xf32> -> vector<8x128xf32>
    %c0_18 = arith.constant 0 : index
    %c0_19 = arith.constant 0 : index
    %27 = vector.load %arg12[%c0_18, %c0_19] : memref<1x128xf32, #tpu.memory_space<vmem>>, vector<1x128xf32>
    %28 = vector.broadcast %27 : vector<1x128xf32> to vector<8x128xf32>
    %29 = arith.addf %26, %28 : vector<8x128xf32>
    %c0_20 = arith.constant 0 : index
    %c0_21 = arith.constant 0 : index
    %30 = vector.load %arg5[%c0_20, %c0_21] : memref<128x128xbf16, #tpu.memory_space<vmem>>, vector<128x128xbf16>
    %31 = arith.truncf %19 : vector<8x128xf32> to vector<8x128xbf16>
    %cst_22 = arith.constant dense<0.000000e+00> : vector<8x128xf32>
    %32 = tpu.matmul %31, %30, %cst_22 {dimension_numbers = #tpu.dot_dimension_numbers<[1], [0], [0], [1], [0, 0, 1, 1], [], []>} : vector<8x128xbf16>, vector<128x128xbf16>, vector<8x128xf32> -> vector<8x128xf32>
    %33 = arith.truncf %24 : vector<8x128xf32> to vector<8x128xbf16>
    %cst_23 = arith.constant dense<0.000000e+00> : vector<8x128xf32>
    %34 = tpu.matmul %33, %30, %cst_23 {dimension_numbers = #tpu.dot_dimension_numbers<[1], [0], [0], [1], [0, 0, 1, 1], [], []>} : vector<8x128xbf16>, vector<128x128xbf16>, vector<8x128xf32> -> vector<8x128xf32>
    %c0_24 = arith.constant 0 : index
    %c0_25 = arith.constant 0 : index
    %35 = vector.load %arg2[%c0_24, %c0_25] : memref<8x128xf32, #tpu.memory_space<vmem>>, vector<8x128xf32>
    %36 = vector.shape_cast %35 : vector<8x128xf32> to vector<1x8x128xf32>
    %c0_26 = arith.constant 0 : index
    %c0_27 = arith.constant 0 : index
    %37 = vector.load %arg3[%c0_26, %c0_27] : memref<8x128xf32, #tpu.memory_space<vmem>>, vector<8x128xf32>
    %38 = vector.shape_cast %37 : vector<8x128xf32> to vector<1x8x128xf32>
    %39 = vector.shape_cast %19 : vector<8x128xf32> to vector<1x8x128xf32>
    %40 = arith.mulf %39, %36 : vector<1x8x128xf32>
    %41 = vector.shape_cast %32 : vector<8x128xf32> to vector<1x8x128xf32>
    %42 = arith.mulf %41, %38 : vector<1x8x128xf32>
    %43 = arith.addf %40, %42 : vector<1x8x128xf32>
    %44 = vector.shape_cast %24 : vector<8x128xf32> to vector<1x8x128xf32>
    %45 = arith.mulf %44, %36 : vector<1x8x128xf32>
    %46 = vector.shape_cast %34 : vector<8x128xf32> to vector<1x8x128xf32>
    %47 = arith.mulf %46, %38 : vector<1x8x128xf32>
    %48 = arith.addf %45, %47 : vector<1x8x128xf32>
    %49 = vector.shape_cast %29 : vector<8x128xf32> to vector<1x8x128xf32>
    %c0_28 = arith.constant 0 : index
    %c0_29 = arith.constant 0 : index
    %50 = vector.load %arg4[%c0_28, %c0_29] : memref<8x128xf32, #tpu.memory_space<vmem>>, vector<8x128xf32>
    %51 = vector.shape_cast %50 : vector<8x128xf32> to vector<1x8x1x128xf32>
    %52 = vector.shape_cast %51 : vector<1x8x1x128xf32> to vector<1x8x1x128xf32>
    %53 = vector.broadcast %52 : vector<1x8x1x128xf32> to vector<1x8x8x128xf32>
    %54 = vector.shape_cast %43 : vector<1x8x128xf32> to vector<1x1x8x128xf32>
    %55 = vector.broadcast %54 : vector<1x1x8x128xf32> to vector<1x8x8x128xf32>
    %56 = arith.mulf %55, %53 : vector<1x8x8x128xf32>
    %57 = vector.shape_cast %56 : vector<1x8x8x128xf32> to vector<1x64x128xf32>
    %58 = arith.truncf %57 : vector<1x64x128xf32> to vector<1x64x128xbf16>
    %59 = arith.truncf %48 : vector<1x8x128xf32> to vector<1x8x128xbf16>
    "tpu.trace_start"() <{level = 10 : i32, message = "bnd,btd->bnt"}> : () -> ()
    %cst_30 = arith.constant dense<0.000000e+00> : vector<1x64x8xf32>
    %60 = tpu.matmul %58, %59, %cst_30 {dimension_numbers = #tpu.dot_dimension_numbers<[2], [2], [1], [1], [0, 0, 0, 1, 1, 1], [0], [0]>} : vector<1x64x128xbf16>, vector<1x8x128xbf16>, vector<1x64x8xf32> -> vector<1x64x8xf32>
    "tpu.trace_stop"() : () -> ()
    %cst_31 = arith.constant dense<0xFF800000> : vector<1x64xf32>
    %61 = vector.multi_reduction <maximumf>, %60, %cst_31 [2] : vector<1x64x8xf32> to vector<1x64xf32>
    %62 = vector.shape_cast %61 : vector<1x64xf32> to vector<1x64x1xf32>
    %63 = vector.broadcast %62 : vector<1x64x1xf32> to vector<1x64x8xf32>
    %64 = arith.subf %60, %63 : vector<1x64x8xf32>
    %65 = math.exp %64 : vector<1x64x8xf32>
    %cst_32 = arith.constant dense<0.000000e+00> : vector<1x64xf32>
    %66 = vector.multi_reduction <add>, %65, %cst_32 [2] : vector<1x64x8xf32> to vector<1x64xf32>
    %67 = vector.shape_cast %66 : vector<1x64xf32> to vector<1x64x1xf32>
    %68 = tpu.reciprocal %67 {approx = true} : vector<1x64x1xf32> -> vector<1x64x1xf32>
    %69 = vector.broadcast %68 : vector<1x64x1xf32> to vector<1x64x8xf32>
    %70 = arith.mulf %65, %69 : vector<1x64x8xf32>
    %71 = arith.truncf %70 : vector<1x64x8xf32> to vector<1x64x8xbf16>
    %72 = arith.truncf %49 : vector<1x8x128xf32> to vector<1x8x128xbf16>
    "tpu.trace_start"() <{level = 10 : i32, message = "bnt,btd->bnd"}> : () -> ()
    %cst_33 = arith.constant dense<0.000000e+00> : vector<1x64x128xf32>
    %73 = tpu.matmul %71, %72, %cst_33 {dimension_numbers = #tpu.dot_dimension_numbers<[2], [1], [1], [2], [0, 0, 0, 1, 1, 2], [0], [0]>} : vector<1x64x8xbf16>, vector<1x8x128xbf16>, vector<1x64x128xf32> -> vector<1x64x128xf32>
    "tpu.trace_stop"() : () -> ()
    %74 = vector.shape_cast %73 : vector<1x64x128xf32> to vector<1x8x8x128xf32>
    %75 = arith.mulf %74, %53 : vector<1x8x8x128xf32>
    %cst_34 = arith.constant dense<0.000000e+00> : vector<1x8x128xf32>
    %76 = vector.multi_reduction <add>, %75, %cst_34 [1] : vector<1x8x8x128xf32> to vector<1x8x128xf32>
    %77 = vector.shape_cast %76 : vector<1x8x128xf32> to vector<8x128xf32>
    %78 = arith.truncf %77 : vector<8x128xf32> to vector<8x128xbf16>
    %c0_35 = arith.constant 0 : index
    %c0_36 = arith.constant 0 : index
    %79 = vector.load %arg13[%c0_35, %c0_36] : memref<128x128xbf16, #tpu.memory_space<vmem>>, vector<128x128xbf16>
    %cst_37 = arith.constant dense<0.000000e+00> : vector<8x128xf32>
    %80 = tpu.matmul %78, %79, %cst_37 {dimension_numbers = #tpu.dot_dimension_numbers<[1], [0], [0], [1], [0, 0, 1, 1], [], []>} : vector<8x128xbf16>, vector<128x128xbf16>, vector<8x128xf32> -> vector<8x128xf32>
    %81 = arith.addf %0, %80 : vector<8x128xf32>
    %c0_38 = arith.constant 0 : index
    %c0_39 = arith.constant 0 : index
    %82 = vector.load %arg14[%c0_38, %c0_39] : memref<1x128xf32, #tpu.memory_space<vmem>>, vector<1x128xf32>
    %83 = vector.broadcast %82 : vector<1x128xf32> to vector<8x128xf32>
    %84 = arith.addf %81, %83 : vector<8x128xf32>
    %c0_40 = arith.constant 0 : index
    %c0_41 = arith.constant 0 : index
    %85 = vector.load %arg15[%c0_40, %c0_41] : memref<1x128xf32, #tpu.memory_space<vmem>>, vector<1x128xf32>
    %86 = arith.mulf %84, %84 : vector<8x128xf32>
    %cst_42 = arith.constant dense<0.000000e+00> : vector<8xf32>
    %87 = vector.multi_reduction <add>, %86, %cst_42 [1] : vector<8x128xf32> to vector<8xf32>
    %88 = vector.shape_cast %87 : vector<8xf32> to vector<8x1xf32>
    %cst_43 = arith.constant 3.125000e-02 : f32
    %89 = vector.broadcast %cst_43 : f32 to vector<8x1xf32>
    %90 = arith.mulf %88, %89 : vector<8x1xf32>
    %cst_44 = arith.constant 1.000000e-16 : f32
    %91 = vector.broadcast %cst_44 : f32 to vector<8x1xf32>
    %92 = arith.addf %90, %91 : vector<8x1xf32>
    %93 = math.rsqrt %92 : vector<8x1xf32>
    %94 = vector.broadcast %93 : vector<8x1xf32> to vector<8x128xf32>
    %95 = arith.mulf %84, %94 : vector<8x128xf32>
    %96 = vector.broadcast %85 : vector<1x128xf32> to vector<8x128xf32>
    %97 = arith.mulf %95, %96 : vector<8x128xf32>
    %98 = arith.truncf %97 : vector<8x128xf32> to vector<8x128xbf16>
    %c0_45 = arith.constant 0 : index
    %c0_46 = arith.constant 0 : index
    %99 = vector.load %arg16[%c0_45, %c0_46] : memref<128x128xbf16, #tpu.memory_space<vmem>>, vector<128x128xbf16>
    %cst_47 = arith.constant dense<0.000000e+00> : vector<8x128xf32>
    %100 = tpu.matmul %98, %99, %cst_47 {dimension_numbers = #tpu.dot_dimension_numbers<[1], [0], [0], [1], [0, 0, 1, 1], [], []>} : vector<8x128xbf16>, vector<128x128xbf16>, vector<8x128xf32> -> vector<8x128xf32>
    %c0_48 = arith.constant 0 : index
    %c0_49 = arith.constant 0 : index
    %101 = vector.load %arg17[%c0_48, %c0_49] : memref<1x128xf32, #tpu.memory_space<vmem>>, vector<1x128xf32>
    %102 = vector.broadcast %101 : vector<1x128xf32> to vector<8x128xf32>
    %103 = arith.addf %100, %102 : vector<8x128xf32>
    %c0_50 = arith.constant 0 : index
    %c0_51 = arith.constant 0 : index
    %104 = vector.load %arg18[%c0_50, %c0_51] : memref<128x128xbf16, #tpu.memory_space<vmem>>, vector<128x128xbf16>
    %cst_52 = arith.constant dense<0.000000e+00> : vector<8x128xf32>
    %105 = tpu.matmul %98, %104, %cst_52 {dimension_numbers = #tpu.dot_dimension_numbers<[1], [0], [0], [1], [0, 0, 1, 1], [], []>} : vector<8x128xbf16>, vector<128x128xbf16>, vector<8x128xf32> -> vector<8x128xf32>
    %c0_53 = arith.constant 0 : index
    %c0_54 = arith.constant 0 : index
    %106 = vector.load %arg19[%c0_53, %c0_54] : memref<1x128xf32, #tpu.memory_space<vmem>>, vector<1x128xf32>
    %107 = vector.broadcast %106 : vector<1x128xf32> to vector<8x128xf32>
    %108 = arith.addf %105, %107 : vector<8x128xf32>
    %cst_55 = arith.constant 0.000000e+00 : f32
    %109 = vector.broadcast %cst_55 : f32 to vector<8x128xf32>
    %110 = arith.subf %109, %103 : vector<8x128xf32>
    %111 = math.exp %110 : vector<8x128xf32>
    %cst_56 = arith.constant 1.000000e+00 : f32
    %112 = vector.broadcast %cst_56 : f32 to vector<8x128xf32>
    %113 = arith.addf %112, %111 : vector<8x128xf32>
    %114 = tpu.reciprocal %113 {approx = true} : vector<8x128xf32> -> vector<8x128xf32>
    %115 = arith.mulf %103, %114 : vector<8x128xf32>
    %116 = arith.mulf %115, %108 : vector<8x128xf32>
    %117 = arith.truncf %116 : vector<8x128xf32> to vector<8x128xbf16>
    %c0_57 = arith.constant 0 : index
    %c0_58 = arith.constant 0 : index
    %118 = vector.load %arg20[%c0_57, %c0_58] : memref<128x128xbf16, #tpu.memory_space<vmem>>, vector<128x128xbf16>
    %cst_59 = arith.constant dense<0.000000e+00> : vector<8x128xf32>
    %119 = tpu.matmul %117, %118, %cst_59 {dimension_numbers = #tpu.dot_dimension_numbers<[1], [0], [0], [1], [0, 0, 1, 1], [], []>} : vector<8x128xbf16>, vector<128x128xbf16>, vector<8x128xf32> -> vector<8x128xf32>
    %120 = arith.addf %84, %119 : vector<8x128xf32>
    %c0_60 = arith.constant 0 : index
    %c0_61 = arith.constant 0 : index
    %121 = vector.load %arg21[%c0_60, %c0_61] : memref<1x128xf32, #tpu.memory_space<vmem>>, vector<1x128xf32>
    %122 = vector.broadcast %121 : vector<1x128xf32> to vector<8x128xf32>
    %123 = arith.addf %120, %122 : vector<8x128xf32>
    %c0_62 = arith.constant 0 : index
    %c0_63 = arith.constant 0 : index
    %124 = vector.load %arg22[%c0_62, %c0_63] : memref<8x128xf32, #tpu.memory_space<vmem>>, vector<8x128xf32>
    tpu.vector_store %arg22[%c0_62, %c0_63], %123 {strides = array<i32>} : memref<8x128xf32, #tpu.memory_space<vmem>>, vector<8x128xf32>,
    return
  }
  func.func @transform_0(%arg0: i32) -> (i32, i32) {
    %c0_i32 = arith.constant 0 : i32
    %c0_i32_0 = arith.constant 0 : i32
    return %arg0, %c0_i32 : i32, i32
  }
  func.func @transform_1(%arg0: i32) -> (i32, i32) {
    %c0_i32 = arith.constant 0 : i32
    %c0_i32_0 = arith.constant 0 : i32
    %c0_i32_1 = arith.constant 0 : i32
    return %c0_i32, %c0_i32_0 : i32, i32
  }
  func.func @transform_2(%arg0: i32) -> (i32, i32) {
    %c0_i32 = arith.constant 0 : i32
    %c0_i32_0 = arith.constant 0 : i32
    %c0_i32_1 = arith.constant 0 : i32
    return %c0_i32, %c0_i32_0 : i32, i32
  }
  func.func @transform_3(%arg0: i32) -> (i32, i32) {
    %c0_i32 = arith.constant 0 : i32
    %c0_i32_0 = arith.constant 0 : i32
    %c0_i32_1 = arith.constant 0 : i32
    return %c0_i32, %c0_i32_0 : i32, i32
  }
  func.func @transform_4(%arg0: i32) -> (i32, i32) {
    %c0_i32 = arith.constant 0 : i32
    %c0_i32_0 = arith.constant 0 : i32
    %c0_i32_1 = arith.constant 0 : i32
    return %c0_i32, %c0_i32_0 : i32, i32
  }
  func.func @transform_5(%arg0: i32) -> (i32, i32) {
    %c0_i32 = arith.constant 0 : i32
    %c0_i32_0 = arith.constant 0 : i32
    %c0_i32_1 = arith.constant 0 : i32
    return %c0_i32, %c0_i32_0 : i32, i32
  }
  func.func @transform_6(%arg0: i32) -> (i32, i32) {
    %c0_i32 = arith.constant 0 : i32
    %c0_i32_0 = arith.constant 0 : i32
    %c0_i32_1 = arith.constant 0 : i32
    return %c0_i32, %c0_i32_0 : i32, i32
  }
  func.func @transform_7(%arg0: i32) -> (i32, i32) {
    %c0_i32 = arith.constant 0 : i32
    %c0_i32_0 = arith.constant 0 : i32
    %c0_i32_1 = arith.constant 0 : i32
    return %c0_i32, %c0_i32_0 : i32, i32
  }
  func.func @transform_8(%arg0: i32) -> (i32, i32) {
    %c0_i32 = arith.constant 0 : i32
    %c0_i32_0 = arith.constant 0 : i32
    %c0_i32_1 = arith.constant 0 : i32
    return %c0_i32, %c0_i32_0 : i32, i32
  }
  func.func @transform_9(%arg0: i32) -> (i32, i32) {
    %c0_i32 = arith.constant 0 : i32
    %c0_i32_0 = arith.constant 0 : i32
    %c0_i32_1 = arith.constant 0 : i32
    return %c0_i32, %c0_i32_0 : i32, i32
  }
  func.func @transform_10(%arg0: i32) -> (i32, i32) {
    %c0_i32 = arith.constant 0 : i32
    %c0_i32_0 = arith.constant 0 : i32
    %c0_i32_1 = arith.constant 0 : i32
    return %c0_i32, %c0_i32_0 : i32, i32
  }
  func.func @transform_11(%arg0: i32) -> (i32, i32) {
    %c0_i32 = arith.constant 0 : i32
    %c0_i32_0 = arith.constant 0 : i32
    %c0_i32_1 = arith.constant 0 : i32
    return %c0_i32, %c0_i32_0 : i32, i32
  }
  func.func @transform_12(%arg0: i32) -> (i32, i32) {
    %c0_i32 = arith.constant 0 : i32
    %c0_i32_0 = arith.constant 0 : i32
    %c0_i32_1 = arith.constant 0 : i32
    return %c0_i32, %c0_i32_0 : i32, i32
  }
  func.func @transform_13(%arg0: i32) -> (i32, i32) {
    %c0_i32 = arith.constant 0 : i32
    %c0_i32_0 = arith.constant 0 : i32
    %c0_i32_1 = arith.constant 0 : i32
    return %c0_i32, %c0_i32_0 : i32, i32
  }
  func.func @transform_14(%arg0: i32) -> (i32, i32) {
    %c0_i32 = arith.constant 0 : i32
    %c0_i32_0 = arith.constant 0 : i32
    %c0_i32_1 = arith.constant 0 : i32
    return %c0_i32, %c0_i32_0 : i32, i32
  }
  func.func @transform_15(%arg0: i32) -> (i32, i32) {
    %c0_i32 = arith.constant 0 : i32
    %c0_i32_0 = arith.constant 0 : i32
    %c0_i32_1 = arith.constant 0 : i32
    return %c0_i32, %c0_i32_0 : i32, i32
  }
  func.func @transform_16(%arg0: i32) -> (i32, i32) {
    %c0_i32 = arith.constant 0 : i32
    %c0_i32_0 = arith.constant 0 : i32
    %c0_i32_1 = arith.constant 0 : i32
    return %c0_i32, %c0_i32_0 : i32, i32
  }
  func.func @transform_17(%arg0: i32) -> (i32, i32) {
    %c0_i32 = arith.constant 0 : i32
    %c0_i32_0 = arith.constant 0 : i32
    %c0_i32_1 = arith.constant 0 : i32
    return %c0_i32, %c0_i32_0 : i32, i32
  }
  func.func @transform_18(%arg0: i32) -> (i32, i32) {
    %c0_i32 = arith.constant 0 : i32
    %c0_i32_0 = arith.constant 0 : i32
    %c0_i32_1 = arith.constant 0 : i32
    return %c0_i32, %c0_i32_0 : i32, i32
  }
  func.func @transform_19(%arg0: i32) -> (i32, i32) {
    %c0_i32 = arith.constant 0 : i32
    %c0_i32_0 = arith.constant 0 : i32
    %c0_i32_1 = arith.constant 0 : i32
    return %c0_i32, %c0_i32_0 : i32, i32
  }
  func.func @transform_20(%arg0: i32) -> (i32, i32) {
    %c0_i32 = arith.constant 0 : i32
    %c0_i32_0 = arith.constant 0 : i32
    %c0_i32_1 = arith.constant 0 : i32
    return %c0_i32, %c0_i32_0 : i32, i32
  }
  func.func @transform_21(%arg0: i32) -> (i32, i32) {
    %c0_i32 = arith.constant 0 : i32
    %c0_i32_0 = arith.constant 0 : i32
    return %arg0, %c0_i32 : i32, i32
  }
}

</mosaic_0001>

<llo_original>
// kernel: transformer_block.1
$region0: #{transformer_block.1}
  #allocation0 [shape = 'u32[]', space=smem, size = 0x4, offset = 0x4, fixed_abs, tag = 'smem constant byte address 0x4 - core index']
  #allocation1 [shape = 'u32[144,128]{1,0:T(1,128)}', space=vmem, size = 0x12000, scoped, tag = 'internal scratch']
  %s0 = inlined_call_operand.vmem [shape: f32[16,128], index: 0, kind: input, shape index: {}, may-alias: {0,21}]
  %s1 = inlined_call_operand.vmem [shape: f32[8,128], index: 1, kind: input, shape index: {}]
  %s2 = inlined_call_operand.vmem [shape: f32[8,128], index: 2, kind: input, shape index: {}]
  %s3 = inlined_call_operand.vmem [shape: f32[8,128], index: 3, kind: input, shape index: {}]
  %s4 = inlined_call_operand.vmem [shape: bf16[128,128], index: 4, kind: input, shape index: {}]
  %s5 = inlined_call_operand.vmem [shape: f32[1,128], index: 5, kind: input, shape index: {}]
  %s6 = inlined_call_operand.vmem [shape: bf16[128,128], index: 6, kind: input, shape index: {}]
  %s7 = inlined_call_operand.vmem [shape: f32[1,128], index: 7, kind: input, shape index: {}]
  %s8 = inlined_call_operand.vmem [shape: bf16[128,128], index: 8, kind: input, shape index: {}]
  %s9 = inlined_call_operand.vmem [shape: f32[1,128], index: 9, kind: input, shape index: {}]
  %s10 = inlined_call_operand.vmem [shape: bf16[128,128], index: 10, kind: input, shape index: {}]
  %s11 = inlined_call_operand.vmem [shape: f32[1,128], index: 11, kind: input, shape index: {}]
  %s12 = inlined_call_operand.vmem [shape: bf16[128,128], index: 12, kind: input, shape index: {}]
  %s13 = inlined_call_operand.vmem [shape: f32[1,128], index: 13, kind: input, shape index: {}]
  %s14 = inlined_call_operand.vmem [shape: f32[1,128], index: 14, kind: input, shape index: {}]
  %s15 = inlined_call_operand.vmem [shape: bf16[128,128], index: 15, kind: input, shape index: {}]
  %s16 = inlined_call_operand.vmem [shape: f32[1,128], index: 16, kind: input, shape index: {}]
  %s17 = inlined_call_operand.vmem [shape: bf16[128,128], index: 17, kind: input, shape index: {}]
  %s18 = inlined_call_operand.vmem [shape: f32[1,128], index: 18, kind: input, shape index: {}]
  %s19 = inlined_call_operand.vmem [shape: bf16[128,128], index: 19, kind: input, shape index: {}]
  %s20 = inlined_call_operand.vmem [shape: f32[1,128], index: 20, kind: input, shape index: {}]
  %s21 = inlined_call_operand.vmem [shape: f32[16,128], index: 21, kind: output, shape index: {}, may-alias: {0,21}]
  %s22 = sld [smem:[#allocation0]]
  $region117: #{transformer_block.1} parent=0
    _
  %s24 = ssub.s32 1, %s22
  %s25 = scalar_select 0, %s24, %s22
  loop: start=0, step=1, limit=4
  $region2: #{transformer_block.1} parent=0 // loop_pre_header
    _
  $region3: #{transformer_block.1} parent=0 // loop_header
    %s27 = sphi 0, %s31
    %p28 = scmp.ge.s32.totalorder %s27, 4
    %s37 = sphi 0, %s39
    %s40 = sphi 0, %s37
    %s41 = sphi 0, %s40
    %s57 = sphi 0, %s41
    %s61 = sphi 0, %s61
    %s63 = sphi 0, %s61
    %s64 = sphi 0, %s63
    %s78 = sphi 0, %s64
    %s82 = sphi 0, %s82
    %s84 = sphi 0, %s82
    %s85 = sphi 0, %s84
    %s99 = sphi 0, %s85
    %s103 = sphi 0, %s103
    %s105 = sphi 0, %s103
    %s106 = sphi 0, %s105
    %s120 = sphi 0, %s106
    %s124 = sphi 0, %s124
    %s126 = sphi 0, %s124
    %s127 = sphi 0, %s126
    %s141 = sphi 0, %s127
    %s145 = sphi 0, %s145
    %s147 = sphi 0, %s145
    %s148 = sphi 0, %s147
    %s162 = sphi 0, %s148
    %s166 = sphi 0, %s166
    %s168 = sphi 0, %s166
    %s169 = sphi 0, %s168
    %s183 = sphi 0, %s169
    %s187 = sphi 0, %s187
    %s189 = sphi 0, %s187
    %s190 = sphi 0, %s189
    %s204 = sphi 0, %s190
    %s208 = sphi 0, %s208
    %s210 = sphi 0, %s208
    %s211 = sphi 0, %s210
    %s225 = sphi 0, %s211
    %s229 = sphi 0, %s229
    %s231 = sphi 0, %s229
    %s232 = sphi 0, %s231
    %s246 = sphi 0, %s232
    %s250 = sphi 0, %s250
    %s252 = sphi 0, %s250
    %s253 = sphi 0, %s252
    %s267 = sphi 0, %s253
    %s271 = sphi 0, %s271
    %s273 = sphi 0, %s271
    %s274 = sphi 0, %s273
    %s288 = sphi 0, %s274
    %s292 = sphi 0, %s292
    %s294 = sphi 0, %s292
    %s295 = sphi 0, %s294
    %s309 = sphi 0, %s295
    %s313 = sphi 0, %s313
    %s315 = sphi 0, %s313
    %s316 = sphi 0, %s315
    %s330 = sphi 0, %s316
    %s334 = sphi 0, %s334
    %s336 = sphi 0, %s334
    %s337 = sphi 0, %s336
    %s351 = sphi 0, %s337
    %s355 = sphi 0, %s355
    %s357 = sphi 0, %s355
    %s358 = sphi 0, %s357
    %s372 = sphi 0, %s358
    %s376 = sphi 0, %s376
    %s378 = sphi 0, %s376
    %s379 = sphi 0, %s378
    %s393 = sphi 0, %s379
    %s397 = sphi 0, %s397
    %s399 = sphi 0, %s397
    %s400 = sphi 0, %s399
    %s414 = sphi 0, %s400
    %s418 = sphi 0, %s418
    %s420 = sphi 0, %s418
    %s421 = sphi 0, %s420
    %s435 = sphi 0, %s421
    %s439 = sphi 0, %s439
    %s441 = sphi 0, %s439
    %s442 = sphi 0, %s441
    %s456 = sphi 0, %s442
    %s460 = sphi 0, %s460
    %s462 = sphi 0, %s460
    %s463 = sphi 0, %s462
    %s477 = sphi 0, %s463
    %s483 = sphi 0, %s485
    %s486 = sphi 0, %s483
    %s487 = sphi 0, %s486
    %s503 = sphi 0, %s487
  $region4: #{transformer_block.1} parent=0 // loop_header_branch
    %30 = sbr.rel (%p28) target = $region8
  $region5: #{transformer_block.1} parent=0 // loop_body
    %s32 = ssub.s32 %s27, 1
    %s33 = ssub.s32 %s27, 2
    %s34 = sadd.s32 %s27, 1
    %s35 = ssub.s32 %s27, %s34
    %p36 = scmp.eq.s32.totalorder %s35, 0
    %s38 = sadd.s32 %s37, 1
    %s39 = scalar_select %p36, %s37, %s38
    %p42 = pneg %p36
    %p43 = scmp.eq.s32.totalorder %s27, 1
    %p44 = por %p42, %p43
    %p45 = scmp.ne.s32.totalorder %s37, %s40
    %p46 = scmp.eq.s32.totalorder %s27, 0
    %p47 = por %p45, %p46
    %p48 = scmp.ne.s32.totalorder %s37, %s40
    %p49 = scmp.eq.s32.totalorder %s32, 1
    %p50 = por %p48, %p49
    %p51 = scmp.ne.s32.totalorder %s40, %s41
    %p52 = scmp.eq.s32.totalorder %s32, 0
    %p53 = por %p51, %p52
    %p54 = scmp.ne.s32.totalorder %s40, %s41
    %p55 = scmp.eq.s32.totalorder %s33, 1
    %p56 = por %p54, %p55
    %p58 = scmp.ne.s32.totalorder %s41, %s57
    %p59 = scmp.eq.s32.totalorder %s33, 0
    %p60 = por %p58, %p59
    %s62 = sadd.s32 %s61, 1
    %p65 = scmp.eq.s32.totalorder %s27, 1
    %p66 = scmp.ne.s32.totalorder %s61, %s63
    %p67 = scmp.eq.s32.totalorder %s27, 0
    %p68 = por %p66, %p67
    %p69 = scmp.ne.s32.totalorder %s61, %s63
    %p70 = scmp.eq.s32.totalorder %s32, 1
    %p71 = por %p69, %p70
    %p72 = scmp.ne.s32.totalorder %s63, %s64
    %p73 = scmp.eq.s32.totalorder %s32, 0
    %p74 = por %p72, %p73
    %p75 = scmp.ne.s32.totalorder %s63, %s64
    %p76 = scmp.eq.s32.totalorder %s33, 1
    %p77 = por %p75, %p76
    %p79 = scmp.ne.s32.totalorder %s64, %s78
    %p80 = scmp.eq.s32.totalorder %s33, 0
    %p81 = por %p79, %p80
    %s83 = sadd.s32 %s82, 1
    %p86 = scmp.eq.s32.totalorder %s27, 1
    %p87 = scmp.ne.s32.totalorder %s82, %s84
    %p88 = scmp.eq.s32.totalorder %s27, 0
    %p89 = por %p87, %p88
    %p90 = scmp.ne.s32.totalorder %s82, %s84
    %p91 = scmp.eq.s32.totalorder %s32, 1
    %p92 = por %p90, %p91
    %p93 = scmp.ne.s32.totalorder %s84, %s85
    %p94 = scmp.eq.s32.totalorder %s32, 0
    %p95 = por %p93, %p94
    %p96 = scmp.ne.s32.totalorder %s84, %s85
    %p97 = scmp.eq.s32.totalorder %s33, 1
    %p98 = por %p96, %p97
    %p100 = scmp.ne.s32.totalorder %s85, %s99
    %p101 = scmp.eq.s32.totalorder %s33, 0
    %p102 = por %p100, %p101
    %s104 = sadd.s32 %s103, 1
    %p107 = scmp.eq.s32.totalorder %s27, 1
    %p108 = scmp.ne.s32.totalorder %s103, %s105
    %p109 = scmp.eq.s32.totalorder %s27, 0
    %p110 = por %p108, %p109
    %p111 = scmp.ne.s32.totalorder %s103, %s105
    %p112 = scmp.eq.s32.totalorder %s32, 1
    %p113 = por %p111, %p112
    %p114 = scmp.ne.s32.totalorder %s105, %s106
    %p115 = scmp.eq.s32.totalorder %s32, 0
    %p116 = por %p114, %p115
    %p117 = scmp.ne.s32.totalorder %s105, %s106
    %p118 = scmp.eq.s32.totalorder %s33, 1
    %p119 = por %p117, %p118
    %p121 = scmp.ne.s32.totalorder %s106, %s120
    %p122 = scmp.eq.s32.totalorder %s33, 0
    %p123 = por %p121, %p122
    %s125 = sadd.s32 %s124, 1
    %p128 = scmp.eq.s32.totalorder %s27, 1
    %p129 = scmp.ne.s32.totalorder %s124, %s126
    %p130 = scmp.eq.s32.totalorder %s27, 0
    %p131 = por %p129, %p130
    %p132 = scmp.ne.s32.totalorder %s124, %s126
    %p133 = scmp.eq.s32.totalorder %s32, 1
    %p134 = por %p132, %p133
    %p135 = scmp.ne.s32.totalorder %s126, %s127
    %p136 = scmp.eq.s32.totalorder %s32, 0
    %p137 = por %p135, %p136
    %p138 = scmp.ne.s32.totalorder %s126, %s127
    %p139 = scmp.eq.s32.totalorder %s33, 1
    %p140 = por %p138, %p139
    %p142 = scmp.ne.s32.totalorder %s127, %s141
    %p143 = scmp.eq.s32.totalorder %s33, 0
    %p144 = por %p142, %p143
    %s146 = sadd.s32 %s145, 1
    %p149 = scmp.eq.s32.totalorder %s27, 1
    %p150 = scmp.ne.s32.totalorder %s145, %s147
    %p151 = scmp.eq.s32.totalorder %s27, 0
    %p152 = por %p150, %p151
    %p153 = scmp.ne.s32.totalorder %s145, %s147
    %p154 = scmp.eq.s32.totalorder %s32, 1
    %p155 = por %p153, %p154
    %p156 = scmp.ne.s32.totalorder %s147, %s148
    %p157 = scmp.eq.s32.totalorder %s32, 0
    %p158 = por %p156, %p157
    %p159 = scmp.ne.s32.totalorder %s147, %s148
    %p160 = scmp.eq.s32.totalorder %s33, 1
    %p161 = por %p159, %p160
    %p163 = scmp.ne.s32.totalorder %s148, %s162
    %p164 = scmp.eq.s32.totalorder %s33, 0
    %p165 = por %p163, %p164
    %s167 = sadd.s32 %s166, 1
    %p170 = scmp.eq.s32.totalorder %s27, 1
    %p171 = scmp.ne.s32.totalorder %s166, %s168
    %p172 = scmp.eq.s32.totalorder %s27, 0
    %p173 = por %p171, %p172
    %p174 = scmp.ne.s32.totalorder %s166, %s168
    %p175 = scmp.eq.s32.totalorder %s32, 1
    %p176 = por %p174, %p175
    %p177 = scmp.ne.s32.totalorder %s168, %s169
    %p178 = scmp.eq.s32.totalorder %s32, 0
    %p179 = por %p177, %p178
    %p180 = scmp.ne.s32.totalorder %s168, %s169
    %p181 = scmp.eq.s32.totalorder %s33, 1
    %p182 = por %p180, %p181
    %p184 = scmp.ne.s32.totalorder %s169, %s183
    %p185 = scmp.eq.s32.totalorder %s33, 0
    %p186 = por %p184, %p185
    %s188 = sadd.s32 %s187, 1
    %p191 = scmp.eq.s32.totalorder %s27, 1
    %p192 = scmp.ne.s32.totalorder %s187, %s189
    %p193 = scmp.eq.s32.totalorder %s27, 0
    %p194 = por %p192, %p193
    %p195 = scmp.ne.s32.totalorder %s187, %s189
    %p196 = scmp.eq.s32.totalorder %s32, 1
    %p197 = por %p195, %p196
    %p198 = scmp.ne.s32.totalorder %s189, %s190
    %p199 = scmp.eq.s32.totalorder %s32, 0
    %p200 = por %p198, %p199
    %p201 = scmp.ne.s32.totalorder %s189, %s190
    %p202 = scmp.eq.s32.totalorder %s33, 1
    %p203 = por %p201, %p202
    %p205 = scmp.ne.s32.totalorder %s190, %s204
    %p206 = scmp.eq.s32.totalorder %s33, 0
    %p207 = por %p205, %p206
    %s209 = sadd.s32 %s208, 1
    %p212 = scmp.eq.s32.totalorder %s27, 1
    %p213 = scmp.ne.s32.totalorder %s208, %s210
    %p214 = scmp.eq.s32.totalorder %s27, 0
    %p215 = por %p213, %p214
    %p216 = scmp.ne.s32.totalorder %s208, %s210
    %p217 = scmp.eq.s32.totalorder %s32, 1
    %p218 = por %p216, %p217
    %p219 = scmp.ne.s32.totalorder %s210, %s211
    %p220 = scmp.eq.s32.totalorder %s32, 0
    %p221 = por %p219, %p220
    %p222 = scmp.ne.s32.totalorder %s210, %s211
    %p223 = scmp.eq.s32.totalorder %s33, 1
    %p224 = por %p222, %p223
    %p226 = scmp.ne.s32.totalorder %s211, %s225
    %p227 = scmp.eq.s32.totalorder %s33, 0
    %p228 = por %p226, %p227
    %s230 = sadd.s32 %s229, 1
    %p233 = scmp.eq.s32.totalorder %s27, 1
    %p234 = scmp.ne.s32.totalorder %s229, %s231
    %p235 = scmp.eq.s32.totalorder %s27, 0
    %p236 = por %p234, %p235
    %p237 = scmp.ne.s32.totalorder %s229, %s231
    %p238 = scmp.eq.s32.totalorder %s32, 1
    %p239 = por %p237, %p238
    %p240 = scmp.ne.s32.totalorder %s231, %s232
    %p241 = scmp.eq.s32.totalorder %s32, 0
    %p242 = por %p240, %p241
    %p243 = scmp.ne.s32.totalorder %s231, %s232
    %p244 = scmp.eq.s32.totalorder %s33, 1
    %p245 = por %p243, %p244
    %p247 = scmp.ne.s32.totalorder %s232, %s246
    %p248 = scmp.eq.s32.totalorder %s33, 0
    %p249 = por %p247, %p248
    %s251 = sadd.s32 %s250, 1
    %p254 = scmp.eq.s32.totalorder %s27, 1
    %p255 = scmp.ne.s32.totalorder %s250, %s252
    %p256 = scmp.eq.s32.totalorder %s27, 0
    %p257 = por %p255, %p256
    %p258 = scmp.ne.s32.totalorder %s250, %s252
    %p259 = scmp.eq.s32.totalorder %s32, 1
    %p260 = por %p258, %p259
    %p261 = scmp.ne.s32.totalorder %s252, %s253
    %p262 = scmp.eq.s32.totalorder %s32, 0
    %p263 = por %p261, %p262
    %p264 = scmp.ne.s32.totalorder %s252, %s253
    %p265 = scmp.eq.s32.totalorder %s33, 1
    %p266 = por %p264, %p265
    %p268 = scmp.ne.s32.totalorder %s253, %s267
    %p269 = scmp.eq.s32.totalorder %s33, 0
    %p270 = por %p268, %p269
    %s272 = sadd.s32 %s271, 1
    %p275 = scmp.eq.s32.totalorder %s27, 1
    %p276 = scmp.ne.s32.totalorder %s271, %s273
    %p277 = scmp.eq.s32.totalorder %s27, 0
    %p278 = por %p276, %p277
    %p279 = scmp.ne.s32.totalorder %s271, %s273
    %p280 = scmp.eq.s32.totalorder %s32, 1
    %p281 = por %p279, %p280
    %p282 = scmp.ne.s32.totalorder %s273, %s274
    %p283 = scmp.eq.s32.totalorder %s32, 0
    %p284 = por %p282, %p283
    %p285 = scmp.ne.s32.totalorder %s273, %s274
    %p286 = scmp.eq.s32.totalorder %s33, 1
    %p287 = por %p285, %p286
    %p289 = scmp.ne.s32.totalorder %s274, %s288
    %p290 = scmp.eq.s32.totalorder %s33, 0
    %p291 = por %p289, %p290
    %s293 = sadd.s32 %s292, 1
    %p296 = scmp.eq.s32.totalorder %s27, 1
    %p297 = scmp.ne.s32.totalorder %s292, %s294
    %p298 = scmp.eq.s32.totalorder %s27, 0
    %p299 = por %p297, %p298
    %p300 = scmp.ne.s32.totalorder %s292, %s294
    %p301 = scmp.eq.s32.totalorder %s32, 1
    %p302 = por %p300, %p301
    %p303 = scmp.ne.s32.totalorder %s294, %s295
    %p304 = scmp.eq.s32.totalorder %s32, 0
    %p305 = por %p303, %p304
    %p306 = scmp.ne.s32.totalorder %s294, %s295
    %p307 = scmp.eq.s32.totalorder %s33, 1
    %p308 = por %p306, %p307
    %p310 = scmp.ne.s32.totalorder %s295, %s309
    %p311 = scmp.eq.s32.totalorder %s33, 0
    %p312 = por %p310, %p311
    %s314 = sadd.s32 %s313, 1
    %p317 = scmp.eq.s32.totalorder %s27, 1
    %p318 = scmp.ne.s32.totalorder %s313, %s315
    %p319 = scmp.eq.s32.totalorder %s27, 0
    %p320 = por %p318, %p319
    %p321 = scmp.ne.s32.totalorder %s313, %s315
    %p322 = scmp.eq.s32.totalorder %s32, 1
    %p323 = por %p321, %p322
    %p324 = scmp.ne.s32.totalorder %s315, %s316
    %p325 = scmp.eq.s32.totalorder %s32, 0
    %p326 = por %p324, %p325
    %p327 = scmp.ne.s32.totalorder %s315, %s316
    %p328 = scmp.eq.s32.totalorder %s33, 1
    %p329 = por %p327, %p328
    %p331 = scmp.ne.s32.totalorder %s316, %s330
    %p332 = scmp.eq.s32.totalorder %s33, 0
    %p333 = por %p331, %p332
    %s335 = sadd.s32 %s334, 1
    %p338 = scmp.eq.s32.totalorder %s27, 1
    %p339 = scmp.ne.s32.totalorder %s334, %s336
    %p340 = scmp.eq.s32.totalorder %s27, 0
    %p341 = por %p339, %p340
    %p342 = scmp.ne.s32.totalorder %s334, %s336
    %p343 = scmp.eq.s32.totalorder %s32, 1
    %p344 = por %p342, %p343
    %p345 = scmp.ne.s32.totalorder %s336, %s337
    %p346 = scmp.eq.s32.totalorder %s32, 0
    %p347 = por %p345, %p346
    %p348 = scmp.ne.s32.totalorder %s336, %s337
    %p349 = scmp.eq.s32.totalorder %s33, 1
    %p350 = por %p348, %p349
    %p352 = scmp.ne.s32.totalorder %s337, %s351
    %p353 = scmp.eq.s32.totalorder %s33, 0
    %p354 = por %p352, %p353
    %s356 = sadd.s32 %s355, 1
    %p359 = scmp.eq.s32.totalorder %s27, 1
    %p360 = scmp.ne.s32.totalorder %s355, %s357
    %p361 = scmp.eq.s32.totalorder %s27, 0
    %p362 = por %p360, %p361
    %p363 = scmp.ne.s32.totalorder %s355, %s357
    %p364 = scmp.eq.s32.totalorder %s32, 1
    %p365 = por %p363, %p364
    %p366 = scmp.ne.s32.totalorder %s357, %s358
    %p367 = scmp.eq.s32.totalorder %s32, 0
    %p368 = por %p366, %p367
    %p369 = scmp.ne.s32.totalorder %s357, %s358
    %p370 = scmp.eq.s32.totalorder %s33, 1
    %p371 = por %p369, %p370
    %p373 = scmp.ne.s32.totalorder %s358, %s372
    %p374 = scmp.eq.s32.totalorder %s33, 0
    %p375 = por %p373, %p374
    %s377 = sadd.s32 %s376, 1
    %p380 = scmp.eq.s32.totalorder %s27, 1
    %p381 = scmp.ne.s32.totalorder %s376, %s378
    %p382 = scmp.eq.s32.totalorder %s27, 0
    %p383 = por %p381, %p382
    %p384 = scmp.ne.s32.totalorder %s376, %s378
    %p385 = scmp.eq.s32.totalorder %s32, 1
    %p386 = por %p384, %p385
    %p387 = scmp.ne.s32.totalorder %s378, %s379
    %p388 = scmp.eq.s32.totalorder %s32, 0
    %p389 = por %p387, %p388
    %p390 = scmp.ne.s32.totalorder %s378, %s379
    %p391 = scmp.eq.s32.totalorder %s33, 1
    %p392 = por %p390, %p391
    %p394 = scmp.ne.s32.totalorder %s379, %s393
    %p395 = scmp.eq.s32.totalorder %s33, 0
    %p396 = por %p394, %p395
    %s398 = sadd.s32 %s397, 1
    %p401 = scmp.eq.s32.totalorder %s27, 1
    %p402 = scmp.ne.s32.totalorder %s397, %s399
    %p403 = scmp.eq.s32.totalorder %s27, 0
    %p404 = por %p402, %p403
    %p405 = scmp.ne.s32.totalorder %s397, %s399
    %p406 = scmp.eq.s32.totalorder %s32, 1
    %p407 = por %p405, %p406
    %p408 = scmp.ne.s32.totalorder %s399, %s400
    %p409 = scmp.eq.s32.totalorder %s32, 0
    %p410 = por %p408, %p409
    %p411 = scmp.ne.s32.totalorder %s399, %s400
    %p412 = scmp.eq.s32.totalorder %s33, 1
    %p413 = por %p411, %p412
    %p415 = scmp.ne.s32.totalorder %s400, %s414
    %p416 = scmp.eq.s32.totalorder %s33, 0
    %p417 = por %p415, %p416
    %s419 = sadd.s32 %s418, 1
    %p422 = scmp.eq.s32.totalorder %s27, 1
    %p423 = scmp.ne.s32.totalorder %s418, %s420
    %p424 = scmp.eq.s32.totalorder %s27, 0
    %p425 = por %p423, %p424
    %p426 = scmp.ne.s32.totalorder %s418, %s420
    %p427 = scmp.eq.s32.totalorder %s32, 1
    %p428 = por %p426, %p427
    %p429 = scmp.ne.s32.totalorder %s420, %s421
    %p430 = scmp.eq.s32.totalorder %s32, 0
    %p431 = por %p429, %p430
    %p432 = scmp.ne.s32.totalorder %s420, %s421
    %p433 = scmp.eq.s32.totalorder %s33, 1
    %p434 = por %p432, %p433
    %p436 = scmp.ne.s32.totalorder %s421, %s435
    %p437 = scmp.eq.s32.totalorder %s33, 0
    %p438 = por %p436, %p437
    %s440 = sadd.s32 %s439, 1
    %p443 = scmp.eq.s32.totalorder %s27, 1
    %p444 = scmp.ne.s32.totalorder %s439, %s441
    %p445 = scmp.eq.s32.totalorder %s27, 0
    %p446 = por %p444, %p445
    %p447 = scmp.ne.s32.totalorder %s439, %s441
    %p448 = scmp.eq.s32.totalorder %s32, 1
    %p449 = por %p447, %p448
    %p450 = scmp.ne.s32.totalorder %s441, %s442
    %p451 = scmp.eq.s32.totalorder %s32, 0
    %p452 = por %p450, %p451
    %p453 = scmp.ne.s32.totalorder %s441, %s442
    %p454 = scmp.eq.s32.totalorder %s33, 1
    %p455 = por %p453, %p454
    %p457 = scmp.ne.s32.totalorder %s442, %s456
    %p458 = scmp.eq.s32.totalorder %s33, 0
    %p459 = por %p457, %p458
    %s461 = sadd.s32 %s460, 1
    %p464 = scmp.eq.s32.totalorder %s27, 1
    %p465 = scmp.ne.s32.totalorder %s460, %s462
    %p466 = scmp.eq.s32.totalorder %s27, 0
    %p467 = por %p465, %p466
    %p468 = scmp.ne.s32.totalorder %s460, %s462
    %p469 = scmp.eq.s32.totalorder %s32, 1
    %p470 = por %p468, %p469
    %p471 = scmp.ne.s32.totalorder %s462, %s463
    %p472 = scmp.eq.s32.totalorder %s32, 0
    %p473 = por %p471, %p472
    %p474 = scmp.ne.s32.totalorder %s462, %s463
    %p475 = scmp.eq.s32.totalorder %s33, 1
    %p476 = por %p474, %p475
    %p478 = scmp.ne.s32.totalorder %s463, %s477
    %p479 = scmp.eq.s32.totalorder %s33, 0
    %p480 = por %p478, %p479
    %s481 = ssub.s32 %s27, %s34
    %p482 = scmp.eq.s32.totalorder %s481, 0
    %s484 = sadd.s32 %s483, 1
    %s485 = scalar_select %p482, %s483, %s484
    %p488 = pneg %p482
    %p489 = scmp.eq.s32.totalorder %s27, 1
    %p490 = por %p488, %p489
    %p491 = scmp.ne.s32.totalorder %s483, %s486
    %p492 = scmp.eq.s32.totalorder %s27, 0
    %p493 = por %p491, %p492
    %p494 = scmp.ne.s32.totalorder %s483, %s486
    %p495 = scmp.eq.s32.totalorder %s32, 1
    %p496 = por %p494, %p495
    %p497 = scmp.ne.s32.totalorder %s486, %s487
    %p498 = scmp.eq.s32.totalorder %s32, 0
    %p499 = por %p497, %p498
    %p500 = scmp.ne.s32.totalorder %s486, %s487
    %p501 = scmp.eq.s32.totalorder %s33, 1
    %p502 = por %p500, %p501
    %p504 = scmp.ne.s32.totalorder %s487, %s503
    %p505 = scmp.eq.s32.totalorder %s33, 0
    %p506 = por %p504, %p505
    %p507 = scmp.le.s32.totalorder 1, %s27
    %p508 = scmp.lt.s32.totalorder %s27, 3
    %p509 = pnand %p507, %p508
    %p510 = pneg %p509
    // Predicated region
    $region9: #{transformer_block.1} parent=5 // pred_check
      _
    $region10: #{transformer_block.1} parent=5 // pred_check_branch
      %512 = sbr.rel (%p509) target = $region12
    $region11: #{transformer_block.1} parent=5 // pred_region
      %s513 = ssub.s32 %s27, 1
      // Predicated region
      $region13: #{transformer_block.1} parent=11 // pred_check
        %p514 = pneg %p74
      $region14: #{transformer_block.1} parent=11 // pred_check_branch
        %516 = sbr.rel (%p514) target = $region16
      $region15: #{transformer_block.1} parent=11 // pred_region
        _
      $region16: #{transformer_block.1} parent=11 // pred_fallthru
        _
      // Predicated region
      $region17: #{transformer_block.1} parent=11 // pred_check
        %p517 = pneg %p95
      $region18: #{transformer_block.1} parent=11 // pred_check_branch
        %519 = sbr.rel (%p517) target = $region20
      $region19: #{transformer_block.1} parent=11 // pred_region
        _
      $region20: #{transformer_block.1} parent=11 // pred_fallthru
        _
      // Predicated region
      $region21: #{transformer_block.1} parent=11 // pred_check
        %p520 = pneg %p116
      $region22: #{transformer_block.1} parent=11 // pred_check_branch
        %522 = sbr.rel (%p520) target = $region24
      $region23: #{transformer_block.1} parent=11 // pred_region
        _
      $region24: #{transformer_block.1} parent=11 // pred_fallthru
        _
      // Predicated region
      $region25: #{transformer_block.1} parent=11 // pred_check
        %p523 = pneg %p137
      $region26: #{transformer_block.1} parent=11 // pred_check_branch
        %525 = sbr.rel (%p523) target = $region28
      $region27: #{transformer_block.1} parent=11 // pred_region
        _
      $region28: #{transformer_block.1} parent=11 // pred_fallthru
        _
      // Predicated region
      $region29: #{transformer_block.1} parent=11 // pred_check
        %p526 = pneg %p158
      $region30: #{transformer_block.1} parent=11 // pred_check_branch
        %528 = sbr.rel (%p526) target = $region32
      $region31: #{transformer_block.1} parent=11 // pred_region
        _
      $region32: #{transformer_block.1} parent=11 // pred_fallthru
        _
      // Predicated region
      $region33: #{transformer_block.1} parent=11 // pred_check
        %p529 = pneg %p179
      $region34: #{transformer_block.1} parent=11 // pred_check_branch
        %531 = sbr.rel (%p529) target = $region36
      $region35: #{transformer_block.1} parent=11 // pred_region
        _
      $region36: #{transformer_block.1} parent=11 // pred_fallthru
        _
      // Predicated region
      $region37: #{transformer_block.1} parent=11 // pred_check
        %p532 = pneg %p200
      $region38: #{transformer_block.1} parent=11 // pred_check_branch
        %534 = sbr.rel (%p532) target = $region40
      $region39: #{transformer_block.1} parent=11 // pred_region
        _
      $region40: #{transformer_block.1} parent=11 // pred_fallthru
        _
      // Predicated region
      $region41: #{transformer_block.1} parent=11 // pred_check
        %p535 = pneg %p221
      $region42: #{transformer_block.1} parent=11 // pred_check_branch
        %537 = sbr.rel (%p535) target = $region44
      $region43: #{transformer_block.1} parent=11 // pred_region
        _
      $region44: #{transformer_block.1} parent=11 // pred_fallthru
        _
      // Predicated region
      $region45: #{transformer_block.1} parent=11 // pred_check
        %p538 = pneg %p242
      $region46: #{transformer_block.1} parent=11 // pred_check_branch
        %540 = sbr.rel (%p538) target = $region48
      $region47: #{transformer_block.1} parent=11 // pred_region
        _
      $region48: #{transformer_block.1} parent=11 // pred_fallthru
        _
      // Predicated region
      $region49: #{transformer_block.1} parent=11 // pred_check
        %p541 = pneg %p263
      $region50: #{transformer_block.1} parent=11 // pred_check_branch
        %543 = sbr.rel (%p541) target = $region52
      $region51: #{transformer_block.1} parent=11 // pred_region
        _
      $region52: #{transformer_block.1} parent=11 // pred_fallthru
        _
      // Predicated region
      $region53: #{transformer_block.1} parent=11 // pred_check
        %p544 = pneg %p284
      $region54: #{transformer_block.1} parent=11 // pred_check_branch
        %546 = sbr.rel (%p544) target = $region56
      $region55: #{transformer_block.1} parent=11 // pred_region
        _
      $region56: #{transformer_block.1} parent=11 // pred_fallthru
        _
      // Predicated region
      $region57: #{transformer_block.1} parent=11 // pred_check
        %p547 = pneg %p305
      $region58: #{transformer_block.1} parent=11 // pred_check_branch
        %549 = sbr.rel (%p547) target = $region60
      $region59: #{transformer_block.1} parent=11 // pred_region
        _
      $region60: #{transformer_block.1} parent=11 // pred_fallthru
        _
      // Predicated region
      $region61: #{transformer_block.1} parent=11 // pred_check
        %p550 = pneg %p326
      $region62: #{transformer_block.1} parent=11 // pred_check_branch
        %552 = sbr.rel (%p550) target = $region64
      $region63: #{transformer_block.1} parent=11 // pred_region
        _
      $region64: #{transformer_block.1} parent=11 // pred_fallthru
        _
      // Predicated region
      $region65: #{transformer_block.1} parent=11 // pred_check
        %p553 = pneg %p347
      $region66: #{transformer_block.1} parent=11 // pred_check_branch
        %555 = sbr.rel (%p553) target = $region68
      $region67: #{transformer_block.1} parent=11 // pred_region
        _
      $region68: #{transformer_block.1} parent=11 // pred_fallthru
        _
      // Predicated region
      $region69: #{transformer_block.1} parent=11 // pred_check
        %p556 = pneg %p368
      $region70: #{transformer_block.1} parent=11 // pred_check_branch
        %558 = sbr.rel (%p556) target = $region72
      $region71: #{transformer_block.1} parent=11 // pred_region
        _
      $region72: #{transformer_block.1} parent=11 // pred_fallthru
        _
      // Predicated region
      $region73: #{transformer_block.1} parent=11 // pred_check
        %p559 = pneg %p389
      $region74: #{transformer_block.1} parent=11 // pred_check_branch
        %561 = sbr.rel (%p559) target = $region76
      $region75: #{transformer_block.1} parent=11 // pred_region
        _
      $region76: #{transformer_block.1} parent=11 // pred_fallthru
        _
      // Predicated region
      $region77: #{transformer_block.1} parent=11 // pred_check
        %p562 = pneg %p410
      $region78: #{transformer_block.1} parent=11 // pred_check_branch
        %564 = sbr.rel (%p562) target = $region80
      $region79: #{transformer_block.1} parent=11 // pred_region
        _
      $region80: #{transformer_block.1} parent=11 // pred_fallthru
        _
      // Predicated region
      $region81: #{transformer_block.1} parent=11 // pred_check
        %p565 = pneg %p431
      $region82: #{transformer_block.1} parent=11 // pred_check_branch
        %567 = sbr.rel (%p565) target = $region84
      $region83: #{transformer_block.1} parent=11 // pred_region
        _
      $region84: #{transformer_block.1} parent=11 // pred_fallthru
        _
      // Predicated region
      $region85: #{transformer_block.1} parent=11 // pred_check
        %p568 = pneg %p452
      $region86: #{transformer_block.1} parent=11 // pred_check_branch
        %570 = sbr.rel (%p568) target = $region88
      $region87: #{transformer_block.1} parent=11 // pred_region
        _
      $region88: #{transformer_block.1} parent=11 // pred_fallthru
        _
      // Predicated region
      $region89: #{transformer_block.1} parent=11 // pred_check
        %p571 = pneg %p473
      $region90: #{transformer_block.1} parent=11 // pred_check_branch
        %573 = sbr.rel (%p571) target = $region92
      $region91: #{transformer_block.1} parent=11 // pred_region
        _
      $region92: #{transformer_block.1} parent=11 // pred_fallthru
        _
    $region12: #{transformer_block.1} parent=5 // pred_fallthru
      _
    %p574 = scmp.lt.s32.totalorder %s27, 2
    // Predicated region
    $region93: #{transformer_block.1} parent=5 // pred_check
      %p575 = pneg %p574
    $region94: #{transformer_block.1} parent=5 // pred_check_branch
      %577 = sbr.rel (%p575) target = $region96
    $region95: #{transformer_block.1} parent=5 // pred_region
      // Predicated region
      $region97: #{transformer_block.1} parent=95 // pred_check
        %p578 = pneg %p47
      $region98: #{transformer_block.1} parent=95 // pred_check_branch
        %580 = sbr.rel (%p578) target = $region100
      $region99: #{transformer_block.1} parent=95 // pred_region
        %p581 = scmp.lt.s32.totalorder %s27, 1
        %s582 = scalar_select %p581, %s27, 1
        %s583 = smul.addr %s582, 8
        %s584 = scalar_lea.vmem %s0, %s583
      $region100: #{transformer_block.1} parent=95 // pred_fallthru
        _
    $region96: #{transformer_block.1} parent=5 // pred_fallthru
      _
    %p585 = scmp.le.s32.totalorder 1, %s27
    %p586 = scmp.lt.s32.totalorder %s27, 3
    %p587 = pnand %p585, %p586
    %p588 = pneg %p587
    // Predicated region
    $region101: #{transformer_block.1} parent=5 // pred_check
      _
    $region102: #{transformer_block.1} parent=5 // pred_check_branch
      %590 = sbr.rel (%p587) target = $region104
    $region103: #{transformer_block.1} parent=5 // pred_region
      %s591 = ssub.s32 %s27, 1
      %p592 = scmp.lt.s32.totalorder %s32, 1
      %s593 = scalar_select %p592, %s32, 1
      %s594 = smul.addr %s593, 8
      %s595 = scalar_lea.vmem %s0, %s594
      %p596 = pneg %p53
      %p597 = pneg %p50
      %p598 = pneg %p74
      %p599 = pneg %p71
      %p600 = pneg %p95
      %p601 = pneg %p92
      %p602 = pneg %p116
      %p603 = pneg %p113
      %p604 = pneg %p137
      %p605 = pneg %p134
      %p606 = pneg %p158
      %p607 = pneg %p155
      %p608 = pneg %p179
      %p609 = pneg %p176
      %p610 = pneg %p200
      %p611 = pneg %p197
      %p612 = pneg %p221
      %p613 = pneg %p218
      %p614 = pneg %p242
      %p615 = pneg %p239
      %p616 = pneg %p263
      %p617 = pneg %p260
      %p618 = pneg %p284
      %p619 = pneg %p281
      %p620 = pneg %p305
      %p621 = pneg %p302
      %p622 = pneg %p326
      %p623 = pneg %p323
      %p624 = pneg %p347
      %p625 = pneg %p344
      %p626 = pneg %p368
      %p627 = pneg %p365
      %p628 = pneg %p389
      %p629 = pneg %p386
      %p630 = pneg %p410
      %p631 = pneg %p407
      %p632 = pneg %p431
      %p633 = pneg %p428
      %p634 = pneg %p452
      %p635 = pneg %p449
      %p636 = pneg %p473
      %p637 = pneg %p470
      %p638 = pneg %p499
      %p639 = pneg %p496
      %p640 = scmp.lt.s32.totalorder %s32, 1
      %s641 = scalar_select %p640, %s32, 1
      %s642 = smul.addr %s641, 8
      %s643 = scalar_lea.vmem %s21, %s642
      %p644 = scmp.lt.s32.totalorder %s32, 1
      %s645 = scalar_select %p644, %s32, 1
      %s646 = smul.addr %s645, 8
      %s647 = scalar_lea.vmem %s0, %s646
      %p648 = scmp.lt.s32.totalorder %s32, 1
      %s649 = scalar_select %p648, %s32, 1
      %s650 = smul.addr %s649, 8
      %s651 = scalar_lea.vmem %s21, %s650
      %v653 = vld [vmem:[%s647] sm:$0xff]
      %v654 = vld [vmem:[%s5] sm:$0x1]
      %v655 = vmul.f32 %v653, %v653
      %656 = vadd.xlane.f32.xlu0 %v655
      %v657 = vpop.xlane.xlu0 %656
      %v658 = vmul.f32 %v657, 0.03125
      %v659 = vadd.f32 %v658, 1e-16
      %v660 = vrsqrt.pop %v659
      %v661 = vmul.f32 %v653, %v660
      %v663 = vlaneseq
      %v664 = vshrl.u32 %v663, 7
      %v665 = vsub.s32 0, %v664
      %v666 = vrot.slane %v654, %v665
      %v668 = vmul.f32 %v661, %v666
      %v669 = vpack.c.bf16 %v668, %v668
      %v670 = vld [vmem:[%s6] sm:$0xf]
      %v671 = vld [vmem:[%s6 + $0x4] sm:$0xf]
      %v672 = vld [vmem:[%s6 + $0x8] sm:$0xf]
      %v673 = vld [vmem:[%s6 + $0xc] sm:$0xf]
      %v674 = vld [vmem:[%s6 + $0x10] sm:$0xf]
      %v675 = vld [vmem:[%s6 + $0x14] sm:$0xf]
      %v676 = vld [vmem:[%s6 + $0x18] sm:$0xf]
      %v677 = vld [vmem:[%s6 + $0x1c] sm:$0xf]
      %v678 = vld [vmem:[%s6 + $0x20] sm:$0xf]
      %v679 = vld [vmem:[%s6 + $0x24] sm:$0xf]
      %v680 = vld [vmem:[%s6 + $0x28] sm:$0xf]
      %v681 = vld [vmem:[%s6 + $0x2c] sm:$0xf]
      %v682 = vld [vmem:[%s6 + $0x30] sm:$0xf]
      %v683 = vld [vmem:[%s6 + $0x34] sm:$0xf]
      %v684 = vld [vmem:[%s6 + $0x38] sm:$0xf]
      %v685 = vld [vmem:[%s6 + $0x3c] sm:$0xf]
      %v686 = vld [vmem:[%s7] sm:$0x1]
      %v688 = vlaneseq
      %v689 = vshrl.u32 %v688, 7
      %v690 = vsub.s32 0, %v689
      %v691 = vrot.slane %v686, %v690
      %v709 = vunpack.c.l.b16 %v670
      %v710 = vunpack.c.l.b16 %v671
      %v711 = vunpack.c.l.b16 %v672
      %v712 = vunpack.c.l.b16 %v673
      %v713 = vunpack.c.l.b16 %v674
      %v714 = vunpack.c.l.b16 %v675
      %v715 = vunpack.c.l.b16 %v676
      %v716 = vunpack.c.l.b16 %v677
      %v717 = vunpack.c.l.b16 %v678
      %v718 = vunpack.c.l.b16 %v679
      %v719 = vunpack.c.l.b16 %v680
      %v720 = vunpack.c.l.b16 %v681
      %v721 = vunpack.c.l.b16 %v682
      %v722 = vunpack.c.l.b16 %v683
      %v723 = vunpack.c.l.b16 %v684
      %v724 = vunpack.c.l.b16 %v685
      %v725 = vpack.c.b16 %v710, %v709
      %v726 = vpack.c.b16 %v712, %v711
      %v727 = vpack.c.b16 %v714, %v713
      %v728 = vpack.c.b16 %v716, %v715
      %v729 = vpack.c.b16 %v718, %v717
      %v730 = vpack.c.b16 %v720, %v719
      %v731 = vpack.c.b16 %v722, %v721
      %v732 = vpack.c.b16 %v724, %v723
      %741 = vmatprep.subr.bf16.mxu0 0
      %742 = vmatpush1.bf16.msra.mxu0 %v725
      %743 = vmatprep.subr.bf16.mxu0 0
      %744 = vmatpush1.bf16.msra.mxu0 %v726
      %745 = vmatprep.subr.bf16.mxu0 0
      %746 = vmatpush1.bf16.msra.mxu0 %v727
      %747 = vmatprep.subr.bf16.mxu0 0
      %748 = vmatpush1.bf16.msra.mxu0 %v728
      %749 = vmatprep.subr.bf16.mxu0 0
      %750 = vmatpush1.bf16.msra.mxu0 %v729
      %751 = vmatprep.subr.bf16.mxu0 0
      %752 = vmatpush1.bf16.msra.mxu0 %v730
      %753 = vmatprep.subr.bf16.mxu0 0
      %754 = vmatpush1.bf16.msra.mxu0 %v731
      %755 = vmatprep.subr.bf16.mxu0 0
      %756 = vmatpush1.bf16.msra.mxu0 %v732
      %757 = vmatprep.subr.bf16.mxu0 0
      %758 = vmatpush1.bf16.msra.mxu0 0
      %759 = vmatprep.subr.bf16.mxu0 0
      %760 = vmatpush1.bf16.msra.mxu0 0
      %761 = vmatprep.subr.bf16.mxu0 0
      %762 = vmatpush1.bf16.msra.mxu0 0
      %763 = vmatprep.subr.bf16.mxu0 0
      %764 = vmatpush1.bf16.msra.mxu0 0
      %765 = vmatprep.subr.bf16.mxu0 0
      %766 = vmatpush1.bf16.msra.mxu0 0
      %767 = vmatprep.subr.bf16.mxu0 0
      %768 = vmatpush1.bf16.msra.mxu0 0
      %769 = vmatprep.subr.bf16.mxu0 0
      %770 = vmatpush1.bf16.msra.mxu0 0
      %771 = vmatprep.subr.bf16.mxu0 0
      %772 = vmatpush1.bf16.msra.mxu0 0
      %773 = vmatprep.mubr.bf16.mxu0 0
      %774 = vmatmul.mubr.bf16.gmra.mrb[0].mxu0 %v669
      %v775 = vpop.f32.mrb[0].mxu0
      %v776 = vadd.f32 %v691, %v775
      %v777 = vpop.f32.mrb[0].mxu0
      %v778 = vpop.f32.mrb[0].mxu0
      %v779 = vpop.f32.mrb[0].mxu0
      %780 = vdwg.mxu0
      %v781 = vld [vmem:[%s8] sm:$0xf]
      %v782 = vld [vmem:[%s8 + $0x4] sm:$0xf]
      %v783 = vld [vmem:[%s8 + $0x8] sm:$0xf]
      %v784 = vld [vmem:[%s8 + $0xc] sm:$0xf]
      %v785 = vld [vmem:[%s8 + $0x10] sm:$0xf]
      %v786 = vld [vmem:[%s8 + $0x14] sm:$0xf]
      %v787 = vld [vmem:[%s8 + $0x18] sm:$0xf]
      %v788 = vld [vmem:[%s8 + $0x1c] sm:$0xf]
      %v789 = vld [vmem:[%s8 + $0x20] sm:$0xf]
      %v790 = vld [vmem:[%s8 + $0x24] sm:$0xf]
      %v791 = vld [vmem:[%s8 + $0x28] sm:$0xf]
      %v792 = vld [vmem:[%s8 + $0x2c] sm:$0xf]
      %v793 = vld [vmem:[%s8 + $0x30] sm:$0xf]
      %v794 = vld [vmem:[%s8 + $0x34] sm:$0xf]
      %v795 = vld [vmem:[%s8 + $0x38] sm:$0xf]
      %v796 = vld [vmem:[%s8 + $0x3c] sm:$0xf]
      %v797 = vld [vmem:[%s9] sm:$0x1]
      %v799 = vlaneseq
      %v800 = vshrl.u32 %v799, 7
      %v801 = vsub.s32 0, %v800
      %v802 = vrot.slane %v797, %v801
      %v820 = vunpack.c.l.b16 %v781
      %v821 = vunpack.c.l.b16 %v782
      %v822 = vunpack.c.l.b16 %v783
      %v823 = vunpack.c.l.b16 %v784
      %v824 = vunpack.c.l.b16 %v785
      %v825 = vunpack.c.l.b16 %v786
      %v826 = vunpack.c.l.b16 %v787
      %v827 = vunpack.c.l.b16 %v788
      %v828 = vunpack.c.l.b16 %v789
      %v829 = vunpack.c.l.b16 %v790
      %v830 = vunpack.c.l.b16 %v791
      %v831 = vunpack.c.l.b16 %v792
      %v832 = vunpack.c.l.b16 %v793
      %v833 = vunpack.c.l.b16 %v794
      %v834 = vunpack.c.l.b16 %v795
      %v835 = vunpack.c.l.b16 %v796
      %v836 = vpack.c.b16 %v821, %v820
      %v837 = vpack.c.b16 %v823, %v822
      %v838 = vpack.c.b16 %v825, %v824
      %v839 = vpack.c.b16 %v827, %v826
      %v840 = vpack.c.b16 %v829, %v828
      %v841 = vpack.c.b16 %v831, %v830
      %v842 = vpack.c.b16 %v833, %v832
      %v843 = vpack.c.b16 %v835, %v834
      %852 = vmatprep.subr.bf16.mxu0 0
      %853 = vmatpush1.bf16.msra.mxu0 %v836
      %854 = vmatprep.subr.bf16.mxu0 0
      %855 = vmatpush1.bf16.msra.mxu0 %v837
      %856 = vmatprep.subr.bf16.mxu0 0
      %857 = vmatpush1.bf16.msra.mxu0 %v838
      %858 = vmatprep.subr.bf16.mxu0 0
      %859 = vmatpush1.bf16.msra.mxu0 %v839
      %860 = vmatprep.subr.bf16.mxu0 0
      %861 = vmatpush1.bf16.msra.mxu0 %v840
      %862 = vmatprep.subr.bf16.mxu0 0
      %863 = vmatpush1.bf16.msra.mxu0 %v841
      %864 = vmatprep.subr.bf16.mxu0 0
      %865 = vmatpush1.bf16.msra.mxu0 %v842
      %866 = vmatprep.subr.bf16.mxu0 0
      %867 = vmatpush1.bf16.msra.mxu0 %v843
      %868 = vmatprep.subr.bf16.mxu0 0
      %869 = vmatpush1.bf16.msra.mxu0 0
      %870 = vmatprep.subr.bf16.mxu0 0
      %871 = vmatpush1.bf16.msra.mxu0 0
      %872 = vmatprep.subr.bf16.mxu0 0
      %873 = vmatpush1.bf16.msra.mxu0 0
      %874 = vmatprep.subr.bf16.mxu0 0
      %875 = vmatpush1.bf16.msra.mxu0 0
      %876 = vmatprep.subr.bf16.mxu0 0
      %877 = vmatpush1.bf16.msra.mxu0 0
      %878 = vmatprep.subr.bf16.mxu0 0
      %879 = vmatpush1.bf16.msra.mxu0 0
      %880 = vmatprep.subr.bf16.mxu0 0
      %881 = vmatpush1.bf16.msra.mxu0 0
      %882 = vmatprep.subr.bf16.mxu0 0
      %883 = vmatpush1.bf16.msra.mxu0 0
      %884 = vmatprep.mubr.bf16.mxu0 0
      %885 = vmatmul.mubr.bf16.gmra.mrb[0].mxu0 %v669
      %v886 = vpop.f32.mrb[0].mxu0
      %v887 = vadd.f32 %v802, %v886
      %v888 = vpop.f32.mrb[0].mxu0
      %v889 = vpop.f32.mrb[0].mxu0
      %v890 = vpop.f32.mrb[0].mxu0
      %891 = vdwg.mxu0
      %v892 = vld [vmem:[%s10] sm:$0xf]
      %v893 = vld [vmem:[%s10 + $0x4] sm:$0xf]
      %v894 = vld [vmem:[%s10 + $0x8] sm:$0xf]
      %v895 = vld [vmem:[%s10 + $0xc] sm:$0xf]
      %v896 = vld [vmem:[%s10 + $0x10] sm:$0xf]
      %v897 = vld [vmem:[%s10 + $0x14] sm:$0xf]
      %v898 = vld [vmem:[%s10 + $0x18] sm:$0xf]
      %v899 = vld [vmem:[%s10 + $0x1c] sm:$0xf]
      %v900 = vld [vmem:[%s10 + $0x20] sm:$0xf]
      %v901 = vld [vmem:[%s10 + $0x24] sm:$0xf]
      %v902 = vld [vmem:[%s10 + $0x28] sm:$0xf]
      %v903 = vld [vmem:[%s10 + $0x2c] sm:$0xf]
      %v904 = vld [vmem:[%s10 + $0x30] sm:$0xf]
      %v905 = vld [vmem:[%s10 + $0x34] sm:$0xf]
      %v906 = vld [vmem:[%s10 + $0x38] sm:$0xf]
      %v907 = vld [vmem:[%s10 + $0x3c] sm:$0xf]
      %v908 = vld [vmem:[%s11] sm:$0x1]
      %v910 = vlaneseq
      %v911 = vshrl.u32 %v910, 7
      %v912 = vsub.s32 0, %v911
      %v913 = vrot.slane %v908, %v912
      %v931 = vunpack.c.l.b16 %v892
      %v932 = vunpack.c.l.b16 %v893
      %v933 = vunpack.c.l.b16 %v894
      %v934 = vunpack.c.l.b16 %v895
      %v935 = vunpack.c.l.b16 %v896
      %v936 = vunpack.c.l.b16 %v897
      %v937 = vunpack.c.l.b16 %v898
      %v938 = vunpack.c.l.b16 %v899
      %v939 = vunpack.c.l.b16 %v900
      %v940 = vunpack.c.l.b16 %v901
      %v941 = vunpack.c.l.b16 %v902
      %v942 = vunpack.c.l.b16 %v903
      %v943 = vunpack.c.l.b16 %v904
      %v944 = vunpack.c.l.b16 %v905
      %v945 = vunpack.c.l.b16 %v906
      %v946 = vunpack.c.l.b16 %v907
      %v947 = vpack.c.b16 %v932, %v931
      %v948 = vpack.c.b16 %v934, %v933
      %v949 = vpack.c.b16 %v936, %v935
      %v950 = vpack.c.b16 %v938, %v937
      %v951 = vpack.c.b16 %v940, %v939
      %v952 = vpack.c.b16 %v942, %v941
      %v953 = vpack.c.b16 %v944, %v943
      %v954 = vpack.c.b16 %v946, %v945
      %963 = vmatprep.subr.bf16.mxu0 0
      %964 = vmatpush1.bf16.msra.mxu0 %v947
      %965 = vmatprep.subr.bf16.mxu0 0
      %966 = vmatpush1.bf16.msra.mxu0 %v948
      %967 = vmatprep.subr.bf16.mxu0 0
      %968 = vmatpush1.bf16.msra.mxu0 %v949
      %969 = vmatprep.subr.bf16.mxu0 0
      %970 = vmatpush1.bf16.msra.mxu0 %v950
      %971 = vmatprep.subr.bf16.mxu0 0
      %972 = vmatpush1.bf16.msra.mxu0 %v951
      %973 = vmatprep.subr.bf16.mxu0 0
      %974 = vmatpush1.bf16.msra.mxu0 %v952
      %975 = vmatprep.subr.bf16.mxu0 0
      %976 = vmatpush1.bf16.msra.mxu0 %v953
      %977 = vmatprep.subr.bf16.mxu0 0
      %978 = vmatpush1.bf16.msra.mxu0 %v954
      %979 = vmatprep.subr.bf16.mxu0 0
      %980 = vmatpush1.bf16.msra.mxu0 0
      %981 = vmatprep.subr.bf16.mxu0 0
      %982 = vmatpush1.bf16.msra.mxu0 0
      %983 = vmatprep.subr.bf16.mxu0 0
      %984 = vmatpush1.bf16.msra.mxu0 0
      %985 = vmatprep.subr.bf16.mxu0 0
      %986 = vmatpush1.bf16.msra.mxu0 0
      %987 = vmatprep.subr.bf16.mxu0 0
      %988 = vmatpush1.bf16.msra.mxu0 0
      %989 = vmatprep.subr.bf16.mxu0 0
      %990 = vmatpush1.bf16.msra.mxu0 0
      %991 = vmatprep.subr.bf16.mxu0 0
      %992 = vmatpush1.bf16.msra.mxu0 0
      %993 = vmatprep.subr.bf16.mxu0 0
      %994 = vmatpush1.bf16.msra.mxu0 0
      %995 = vmatprep.mubr.bf16.mxu0 0
      %996 = vmatmul.mubr.bf16.gmra.mrb[0].mxu0 %v669
      %v997 = vpop.f32.mrb[0].mxu0
      %v998 = vadd.f32 %v913, %v997
      %v999 = vpop.f32.mrb[0].mxu0
      %v1000 = vpop.f32.mrb[0].mxu0
      %v1001 = vpop.f32.mrb[0].mxu0
      %1002 = vdwg.mxu0
      %v1003 = vld [vmem:[%s4] sm:$0xf]
      %v1004 = vld [vmem:[%s4 + $0x4] sm:$0xf]
      %v1005 = vld [vmem:[%s4 + $0x8] sm:$0xf]
      %v1006 = vld [vmem:[%s4 + $0xc] sm:$0xf]
      %v1007 = vld [vmem:[%s4 + $0x10] sm:$0xf]
      %v1008 = vld [vmem:[%s4 + $0x14] sm:$0xf]
      %v1009 = vld [vmem:[%s4 + $0x18] sm:$0xf]
      %v1010 = vld [vmem:[%s4 + $0x1c] sm:$0xf]
      %v1011 = vld [vmem:[%s4 + $0x20] sm:$0xf]
      %v1012 = vld [vmem:[%s4 + $0x24] sm:$0xf]
      %v1013 = vld [vmem:[%s4 + $0x28] sm:$0xf]
      %v1014 = vld [vmem:[%s4 + $0x2c] sm:$0xf]
      %v1015 = vld [vmem:[%s4 + $0x30] sm:$0xf]
      %v1016 = vld [vmem:[%s4 + $0x34] sm:$0xf]
      %v1017 = vld [vmem:[%s4 + $0x38] sm:$0xf]
      %v1018 = vld [vmem:[%s4 + $0x3c] sm:$0xf]
      %v1019 = vpack.c.bf16 %v776, %v776
      %v1036 = vunpack.c.l.b16 %v1003
      %v1037 = vunpack.c.l.b16 %v1004
      %v1038 = vunpack.c.l.b16 %v1005
      %v1039 = vunpack.c.l.b16 %v1006
      %v1040 = vunpack.c.l.b16 %v1007
      %v1041 = vunpack.c.l.b16 %v1008
      %v1042 = vunpack.c.l.b16 %v1009
      %v1043 = vunpack.c.l.b16 %v1010
      %v1044 = vunpack.c.l.b16 %v1011
      %v1045 = vunpack.c.l.b16 %v1012
      %v1046 = vunpack.c.l.b16 %v1013
      %v1047 = vunpack.c.l.b16 %v1014
      %v1048 = vunpack.c.l.b16 %v1015
      %v1049 = vunpack.c.l.b16 %v1016
      %v1050 = vunpack.c.l.b16 %v1017
      %v1051 = vunpack.c.l.b16 %v1018
      %v1052 = vpack.c.b16 %v1037, %v1036
      %v1053 = vpack.c.b16 %v1039, %v1038
      %v1054 = vpack.c.b16 %v1041, %v1040
      %v1055 = vpack.c.b16 %v1043, %v1042
      %v1056 = vpack.c.b16 %v1045, %v1044
      %v1057 = vpack.c.b16 %v1047, %v1046
      %v1058 = vpack.c.b16 %v1049, %v1048
      %v1059 = vpack.c.b16 %v1051, %v1050
      %1068 = vmatprep.subr.bf16.mxu0 0
      %1069 = vmatpush1.bf16.msra.mxu0 %v1052
      %1070 = vmatprep.subr.bf16.mxu0 0
      %1071 = vmatpush1.bf16.msra.mxu0 %v1053
      %1072 = vmatprep.subr.bf16.mxu0 0
      %1073 = vmatpush1.bf16.msra.mxu0 %v1054
      %1074 = vmatprep.subr.bf16.mxu0 0
      %1075 = vmatpush1.bf16.msra.mxu0 %v1055
      %1076 = vmatprep.subr.bf16.mxu0 0
      %1077 = vmatpush1.bf16.msra.mxu0 %v1056
      %1078 = vmatprep.subr.bf16.mxu0 0
      %1079 = vmatpush1.bf16.msra.mxu0 %v1057
      %1080 = vmatprep.subr.bf16.mxu0 0
      %1081 = vmatpush1.bf16.msra.mxu0 %v1058
      %1082 = vmatprep.subr.bf16.mxu0 0
      %1083 = vmatpush1.bf16.msra.mxu0 %v1059
      %1084 = vmatprep.subr.bf16.mxu0 0
      %1085 = vmatpush1.bf16.msra.mxu0 0
      %1086 = vmatprep.subr.bf16.mxu0 0
      %1087 = vmatpush1.bf16.msra.mxu0 0
      %1088 = vmatprep.subr.bf16.mxu0 0
      %1089 = vmatpush1.bf16.msra.mxu0 0
      %1090 = vmatprep.subr.bf16.mxu0 0
      %1091 = vmatpush1.bf16.msra.mxu0 0
      %1092 = vmatprep.subr.bf16.mxu0 0
      %1093 = vmatpush1.bf16.msra.mxu0 0
      %1094 = vmatprep.subr.bf16.mxu0 0
      %1095 = vmatpush1.bf16.msra.mxu0 0
      %1096 = vmatprep.subr.bf16.mxu0 0
      %1097 = vmatpush1.bf16.msra.mxu0 0
      %1098 = vmatprep.subr.bf16.mxu0 0
      %1099 = vmatpush1.bf16.msra.mxu0 0
      %1100 = vmatprep.mubr.bf16.mxu0 0
      %1101 = vmatmul.mubr.bf16.gmra.mrb[0].mxu0 %v1019
      %v1102 = vpop.f32.mrb[0].mxu0
      %v1103 = vadd.f32 0.0, %v1102
      %v1104 = vpop.f32.mrb[0].mxu0
      %v1105 = vpop.f32.mrb[0].mxu0
      %v1106 = vpop.f32.mrb[0].mxu0
      %1107 = vdwg.mxu0
      %v1108 = vpack.c.bf16 %v887, %v887
      %1109 = vmatprep.subr.bf16.mxu0 0
      %1110 = vmatpush1.bf16.msra.mxu0 %v1052
      %1111 = vmatprep.subr.bf16.mxu0 0
      %1112 = vmatpush1.bf16.msra.mxu0 %v1053
      %1113 = vmatprep.subr.bf16.mxu0 0
      %1114 = vmatpush1.bf16.msra.mxu0 %v1054
      %1115 = vmatprep.subr.bf16.mxu0 0
      %1116 = vmatpush1.bf16.msra.mxu0 %v1055
      %1117 = vmatprep.subr.bf16.mxu0 0
      %1118 = vmatpush1.bf16.msra.mxu0 %v1056
      %1119 = vmatprep.subr.bf16.mxu0 0
      %1120 = vmatpush1.bf16.msra.mxu0 %v1057
      %1121 = vmatprep.subr.bf16.mxu0 0
      %1122 = vmatpush1.bf16.msra.mxu0 %v1058
      %1123 = vmatprep.subr.bf16.mxu0 0
      %1124 = vmatpush1.bf16.msra.mxu0 %v1059
      %1125 = vmatprep.subr.bf16.mxu0 0
      %1126 = vmatpush1.bf16.msra.mxu0 0
      %1127 = vmatprep.subr.bf16.mxu0 0
      %1128 = vmatpush1.bf16.msra.mxu0 0
      %1129 = vmatprep.subr.bf16.mxu0 0
      %1130 = vmatpush1.bf16.msra.mxu0 0
      %1131 = vmatprep.subr.bf16.mxu0 0
      %1132 = vmatpush1.bf16.msra.mxu0 0
      %1133 = vmatprep.subr.bf16.mxu0 0
      %1134 = vmatpush1.bf16.msra.mxu0 0
      %1135 = vmatprep.subr.bf16.mxu0 0
      %1136 = vmatpush1.bf16.msra.mxu0 0
      %1137 = vmatprep.subr.bf16.mxu0 0
      %1138 = vmatpush1.bf16.msra.mxu0 0
      %1139 = vmatprep.subr.bf16.mxu0 0
      %1140 = vmatpush1.bf16.msra.mxu0 0
      %1141 = vmatprep.mubr.bf16.mxu0 0
      %1142 = vmatmul.mubr.bf16.gmra.mrb[0].mxu0 %v1108
      %v1143 = vpop.f32.mrb[0].mxu0
      %v1144 = vadd.f32 0.0, %v1143
      %v1145 = vpop.f32.mrb[0].mxu0
      %v1146 = vpop.f32.mrb[0].mxu0
      %v1147 = vpop.f32.mrb[0].mxu0
      %1148 = vdwg.mxu0
      %v1149 = vld [vmem:[%s1] sm:$0xff]
      %v1150 = vld [vmem:[%s2] sm:$0xff]
      %v1151 = vmul.f32 %v776, %v1149
      %v1152 = vmul.f32 %v1103, %v1150
      %v1153 = vadd.f32 %v1151, %v1152
      %v1154 = vmul.f32 %v887, %v1149
      %v1155 = vmul.f32 %v1144, %v1150
      %v1156 = vadd.f32 %v1154, %v1155
      %v1157 = vld [vmem:[%s3] sm:$0xff]
      %v1159 = vcombine.high %v1157, %v1157
      %v1161 = vunpack.c.l.s4 1966171168
      %v1162 = vunpack.c.0.s8 %v1161
      %v1163 = vlaneseq
      %v1164 = vshrl.u32 %v1163, 7
      %v1165 = vsub.s32 %v1162, %v1164
      %v1166 = vrot.slane %v1157, %v1165
      %v1168 = vunpack.c.l.s4 1966171168
      %v1169 = vunpack.c.0.s8 %v1168
      %v1170 = vlaneseq
      %v1171 = vshrl.u32 %v1170, 7
      %v1172 = vsub.s32 %v1169, %v1171
      %v1173 = vrot.slane %v1159, %v1172
      %v1174 = vcombine.high %v1166, %v1166
      %v1175 = vcombine.high %v1173, %v1173
      %v1177 = vunpack.c.l.s4 1966171168
      %v1178 = vunpack.c.0.s8 %v1177
      %v1179 = vlaneseq
      %v1180 = vshrl.u32 %v1179, 7
      %v1181 = vsub.s32 %v1178, %v1180
      %v1182 = vrot.slane %v1166, %v1181
      %v1184 = vunpack.c.l.s4 1966171168
      %v1185 = vunpack.c.0.s8 %v1184
      %v1186 = vlaneseq
      %v1187 = vshrl.u32 %v1186, 7
      %v1188 = vsub.s32 %v1185, %v1187
      %v1189 = vrot.slane %v1173, %v1188
      %v1191 = vunpack.c.l.s4 1966171168
      %v1192 = vunpack.c.0.s8 %v1191
      %v1193 = vlaneseq
      %v1194 = vshrl.u32 %v1193, 7
      %v1195 = vsub.s32 %v1192, %v1194
      %v1196 = vrot.slane %v1174, %v1195
      %v1198 = vunpack.c.l.s4 1966171168
      %v1199 = vunpack.c.0.s8 %v1198
      %v1200 = vlaneseq
      %v1201 = vshrl.u32 %v1200, 7
      %v1202 = vsub.s32 %v1199, %v1201
      %v1203 = vrot.slane %v1175, %v1202
      %v1204 = vcombine.high %v1182, %v1182
      %v1205 = vcombine.high %v1189, %v1189
      %v1206 = vcombine.high %v1196, %v1196
      %v1207 = vcombine.high %v1203, %v1203
      %v1208 = vlaneseq
      %v1209 = vshrl.u32 %v1208, 7
      %v1210 = vsub.s32 0, %v1209
      %v1211 = vrot.slane %v1182, %v1210
      %v1212 = vlaneseq
      %v1213 = vshrl.u32 %v1212, 7
      %v1214 = vsub.s32 0, %v1213
      %v1215 = vrot.slane %v1196, %v1214
      %v1216 = vlaneseq
      %v1217 = vshrl.u32 %v1216, 7
      %v1218 = vsub.s32 0, %v1217
      %v1219 = vrot.slane %v1204, %v1218
      %v1220 = vlaneseq
      %v1221 = vshrl.u32 %v1220, 7
      %v1222 = vsub.s32 0, %v1221
      %v1223 = vrot.slane %v1206, %v1222
      %v1224 = vlaneseq
      %v1225 = vshrl.u32 %v1224, 7
      %v1226 = vsub.s32 0, %v1225
      %v1227 = vrot.slane %v1189, %v1226
      %v1228 = vlaneseq
      %v1229 = vshrl.u32 %v1228, 7
      %v1230 = vsub.s32 0, %v1229
      %v1231 = vrot.slane %v1203, %v1230
      %v1232 = vlaneseq
      %v1233 = vshrl.u32 %v1232, 7
      %v1234 = vsub.s32 0, %v1233
      %v1235 = vrot.slane %v1205, %v1234
      %v1236 = vlaneseq
      %v1237 = vshrl.u32 %v1236, 7
      %v1238 = vsub.s32 0, %v1237
      %v1239 = vrot.slane %v1207, %v1238
      %v1248 = vmul.f32 %v1153, %v1211
      %v1249 = vmul.f32 %v1153, %v1215
      %v1250 = vmul.f32 %v1153, %v1219
      %v1251 = vmul.f32 %v1153, %v1223
      %v1252 = vmul.f32 %v1153, %v1227
      %v1253 = vmul.f32 %v1153, %v1231
      %v1254 = vmul.f32 %v1153, %v1235
      %v1255 = vmul.f32 %v1153, %v1239
      %v1256 = vpack.c.bf16 %v1249, %v1248
      %v1257 = vpack.c.bf16 %v1251, %v1250
      %v1258 = vpack.c.bf16 %v1253, %v1252
      %v1259 = vpack.c.bf16 %v1255, %v1254
      %v1260 = vpack.c.bf16 %v1156, %v1156
      %1261 = vmatprep.subr.bf16.mxu0 0
      %1262 = vmatpush1.bf16.xpose.msra.mxu0 %v1260
      %1263 = vmatprep.subr.bf16.mxu0 0
      %1264 = vmatpush1.bf16.xpose.msra.mxu0 0
      %1265 = vmatprep.subr.bf16.mxu0 0
      %1266 = vmatpush1.bf16.xpose.msra.mxu0 0
      %1267 = vmatprep.subr.bf16.mxu0 0
      %1268 = vmatpush1.bf16.xpose.msra.mxu0 0
      %1269 = vmatprep.subr.bf16.mxu0 0
      %1270 = vmatpush1.bf16.xpose.msra.mxu0 0
      %1271 = vmatprep.subr.bf16.mxu0 0
      %1272 = vmatpush1.bf16.xpose.msra.mxu0 0
      %1273 = vmatprep.subr.bf16.mxu0 0
      %1274 = vmatpush1.bf16.xpose.msra.mxu0 0
      %1275 = vmatprep.subr.bf16.mxu0 0
      %1276 = vmatpush1.bf16.xpose.msra.mxu0 0
      %1277 = vmatprep.subr.bf16.mxu0 0
      %1278 = vmatpush1.bf16.xpose.msra.mxu0 0
      %1279 = vmatprep.subr.bf16.mxu0 0
      %1280 = vmatpush1.bf16.xpose.msra.mxu0 0
      %1281 = vmatprep.subr.bf16.mxu0 0
      %1282 = vmatpush1.bf16.xpose.msra.mxu0 0
      %1283 = vmatprep.subr.bf16.mxu0 0
      %1284 = vmatpush1.bf16.xpose.msra.mxu0 0
      %1285 = vmatprep.subr.bf16.mxu0 0
      %1286 = vmatpush1.bf16.xpose.msra.mxu0 0
      %1287 = vmatprep.subr.bf16.mxu0 0
      %1288 = vmatpush1.bf16.xpose.msra.mxu0 0
      %1289 = vmatprep.subr.bf16.mxu0 0
      %1290 = vmatpush1.bf16.xpose.msra.mxu0 0
      %1291 = vmatprep.subr.bf16.mxu0 0
      %1292 = vmatpush1.bf16.xpose.msra.mxu0 0
      %1293 = vmatprep.mubr.bf16.mxu0 0
      %1294 = vmatmul.mubr.bf16.gmra.mrb[0].mxu0 %v1256
      %v1295 = vpop.f32.mrb[0].mxu0
      %v1296 = vadd.f32 0.0, %v1295
      %v1297 = vpop.f32.mrb[0].mxu0
      %v1298 = vpop.f32.mrb[0].mxu0
      %v1299 = vadd.f32 0.0, %v1298
      %v1300 = vpop.f32.mrb[0].mxu0
      %1301 = vmatprep.mubr.bf16.mxu0 0
      %1302 = vmatmul.mubr.bf16.gmra.mrb[0].mxu0 %v1257
      %v1303 = vpop.f32.mrb[0].mxu0
      %v1304 = vadd.f32 0.0, %v1303
      %v1305 = vpop.f32.mrb[0].mxu0
      %v1306 = vpop.f32.mrb[0].mxu0
      %v1307 = vadd.f32 0.0, %v1306
      %v1308 = vpop.f32.mrb[0].mxu0
      %1309 = vmatprep.mubr.bf16.mxu0 0
      %1310 = vmatmul.mubr.bf16.gmra.mrb[0].mxu0 %v1258
      %v1311 = vpop.f32.mrb[0].mxu0
      %v1312 = vadd.f32 0.0, %v1311
      %v1313 = vpop.f32.mrb[0].mxu0
      %v1314 = vpop.f32.mrb[0].mxu0
      %v1315 = vadd.f32 0.0, %v1314
      %v1316 = vpop.f32.mrb[0].mxu0
      %1317 = vmatprep.mubr.bf16.mxu0 0
      %1318 = vmatmul.mubr.bf16.gmra.mrb[0].mxu0 %v1259
      %v1319 = vpop.f32.mrb[0].mxu0
      %v1320 = vadd.f32 0.0, %v1319
      %v1321 = vpop.f32.mrb[0].mxu0
      %v1322 = vpop.f32.mrb[0].mxu0
      %v1323 = vadd.f32 0.0, %v1322
      %v1324 = vpop.f32.mrb[0].mxu0
      %1325 = vdwg.mxu0
      %vm1326 = vcmask 64512
      %v1327 = vsel %vm1326, %v1296, -inf
      %1328 = vmax.xlane.f32.xlu0 %v1327
      %v1329 = vpop.xlane.xlu0 %1328
      %v1330 = vsel %vm1326, %v1299, -inf
      %1331 = vmax.xlane.f32.xlu0 %v1330
      %v1332 = vpop.xlane.xlu0 %1331
      %v1333 = vsel %vm1326, %v1304, -inf
      %1334 = vmax.xlane.f32.xlu0 %v1333
      %v1335 = vpop.xlane.xlu0 %1334
      %v1336 = vsel %vm1326, %v1307, -inf
      %1337 = vmax.xlane.f32.xlu0 %v1336
      %v1338 = vpop.xlane.xlu0 %1337
      %v1339 = vsel %vm1326, %v1312, -inf
      %1340 = vmax.xlane.f32.xlu0 %v1339
      %v1341 = vpop.xlane.xlu0 %1340
      %v1342 = vsel %vm1326, %v1315, -inf
      %1343 = vmax.xlane.f32.xlu0 %v1342
      %v1344 = vpop.xlane.xlu0 %1343
      %v1345 = vsel %vm1326, %v1320, -inf
      %1346 = vmax.xlane.f32.xlu0 %v1345
      %v1347 = vpop.xlane.xlu0 %1346
      %v1348 = vsel %vm1326, %v1323, -inf
      %1349 = vmax.xlane.f32.xlu0 %v1348
      %v1350 = vpop.xlane.xlu0 %1349
      %v1351 = vsub.f32 %v1296, %v1329
      %v1352 = vsub.f32 %v1299, %v1332
      %v1353 = vsub.f32 %v1304, %v1335
      %v1354 = vsub.f32 %v1307, %v1338
      %v1355 = vsub.f32 %v1312, %v1341
      %v1356 = vsub.f32 %v1315, %v1344
      %v1357 = vsub.f32 %v1320, %v1347
      %v1358 = vsub.f32 %v1323, %v1350
      %v1359 = vmul.f32 %v1351, 1.442695
      %v1360 = vpow.pop %v1359
      %v1361 = vmul.f32 %v1352, 1.442695
      %v1362 = vpow.pop %v1361
      %v1363 = vmul.f32 %v1353, 1.442695
      %v1364 = vpow.pop %v1363
      %v1365 = vmul.f32 %v1354, 1.442695
      %v1366 = vpow.pop %v1365
      %v1367 = vmul.f32 %v1355, 1.442695
      %v1368 = vpow.pop %v1367
      %v1369 = vmul.f32 %v1356, 1.442695
      %v1370 = vpow.pop %v1369
      %v1371 = vmul.f32 %v1357, 1.442695
      %v1372 = vpow.pop %v1371
      %v1373 = vmul.f32 %v1358, 1.442695
      %v1374 = vpow.pop %v1373
      %v1375 = vsel %vm1326, %v1360, 0.0
      %1376 = vadd.xlane.f32.xlu0 %v1375
      %v1377 = vpop.xlane.xlu0 %1376
      %v1378 = vsel %vm1326, %v1362, 0.0
      %1379 = vadd.xlane.f32.xlu0 %v1378
      %v1380 = vpop.xlane.xlu0 %1379
      %v1381 = vsel %vm1326, %v1364, 0.0
      %1382 = vadd.xlane.f32.xlu0 %v1381
      %v1383 = vpop.xlane.xlu0 %1382
      %v1384 = vsel %vm1326, %v1366, 0.0
      %1385 = vadd.xlane.f32.xlu0 %v1384
      %v1386 = vpop.xlane.xlu0 %1385
      %v1387 = vsel %vm1326, %v1368, 0.0
      %1388 = vadd.xlane.f32.xlu0 %v1387
      %v1389 = vpop.xlane.xlu0 %1388
      %v1390 = vsel %vm1326, %v1370, 0.0
      %1391 = vadd.xlane.f32.xlu0 %v1390
      %v1392 = vpop.xlane.xlu0 %1391
      %v1393 = vsel %vm1326, %v1372, 0.0
      %1394 = vadd.xlane.f32.xlu0 %v1393
      %v1395 = vpop.xlane.xlu0 %1394
      %v1396 = vsel %vm1326, %v1374, 0.0
      %1397 = vadd.xlane.f32.xlu0 %v1396
      %v1398 = vpop.xlane.xlu0 %1397
      %v1399 = vrcp.pop %v1377
      %v1400 = vrcp.pop %v1380
      %v1401 = vrcp.pop %v1383
      %v1402 = vrcp.pop %v1386
      %v1403 = vrcp.pop %v1389
      %v1404 = vrcp.pop %v1392
      %v1405 = vrcp.pop %v1395
      %v1406 = vrcp.pop %v1398
      %v1407 = vmul.f32 %v1360, %v1399
      %v1408 = vmul.f32 %v1362, %v1400
      %v1409 = vmul.f32 %v1364, %v1401
      %v1410 = vmul.f32 %v1366, %v1402
      %v1411 = vmul.f32 %v1368, %v1403
      %v1412 = vmul.f32 %v1370, %v1404
      %v1413 = vmul.f32 %v1372, %v1405
      %v1414 = vmul.f32 %v1374, %v1406
      %v1415 = vpack.c.bf16 %v1408, %v1407
      %v1416 = vpack.c.bf16 %v1410, %v1409
      %v1417 = vpack.c.bf16 %v1412, %v1411
      %v1418 = vpack.c.bf16 %v1414, %v1413
      %v1419 = vpack.c.bf16 %v998, %v998
      %v1421 = vsel %vm1326, %v1415, 0
      %v1424 = vsel %vm1326, %v1416, 0
      %v1427 = vsel %vm1326, %v1417, 0
      %v1430 = vsel %vm1326, %v1418, 0
      %vm1432 = vcmask 1043456
      %v1434 = vsel %vm1432, %v1419, 0
      %1436 = vmatprep.subr.bf16.mxu0 0
      %1437 = vmatpush1.bf16.msra.mxu0 %v1434
      %1438 = vmatprep.subr.bf16.mxu0 0
      %1439 = vmatpush1.bf16.msra.mxu0 0
      %1440 = vmatprep.subr.bf16.mxu0 0
      %1441 = vmatpush1.bf16.msra.mxu0 0
      %1442 = vmatprep.subr.bf16.mxu0 0
      %1443 = vmatpush1.bf16.msra.mxu0 0
      %1444 = vmatprep.subr.bf16.mxu0 0
      %1445 = vmatpush1.bf16.msra.mxu0 0
      %1446 = vmatprep.subr.bf16.mxu0 0
      %1447 = vmatpush1.bf16.msra.mxu0 0
      %1448 = vmatprep.subr.bf16.mxu0 0
      %1449 = vmatpush1.bf16.msra.mxu0 0
      %1450 = vmatprep.subr.bf16.mxu0 0
      %1451 = vmatpush1.bf16.msra.mxu0 0
      %1452 = vmatprep.subr.bf16.mxu0 0
      %1453 = vmatpush1.bf16.msra.mxu0 0
      %1454 = vmatprep.subr.bf16.mxu0 0
      %1455 = vmatpush1.bf16.msra.mxu0 0
      %1456 = vmatprep.subr.bf16.mxu0 0
      %1457 = vmatpush1.bf16.msra.mxu0 0
      %1458 = vmatprep.subr.bf16.mxu0 0
      %1459 = vmatpush1.bf16.msra.mxu0 0
      %1460 = vmatprep.subr.bf16.mxu0 0
      %1461 = vmatpush1.bf16.msra.mxu0 0
      %1462 = vmatprep.subr.bf16.mxu0 0
      %1463 = vmatpush1.bf16.msra.mxu0 0
      %1464 = vmatprep.subr.bf16.mxu0 0
      %1465 = vmatpush1.bf16.msra.mxu0 0
      %1466 = vmatprep.subr.bf16.mxu0 0
      %1467 = vmatpush1.bf16.msra.mxu0 0
      %1468 = vmatprep.mubr.bf16.mxu0 0
      %1469 = vmatmul.mubr.bf16.gmra.mrb[0].mxu0 %v1421
      %v1470 = vpop.f32.mrb[0].mxu0
      %v1471 = vadd.f32 0.0, %v1470
      %v1472 = vpop.f32.mrb[0].mxu0
      %v1473 = vpop.f32.mrb[0].mxu0
      %v1474 = vadd.f32 0.0, %v1473
      %v1475 = vpop.f32.mrb[0].mxu0
      %1476 = vmatprep.mubr.bf16.mxu0 0
      %1477 = vmatmul.mubr.bf16.gmra.mrb[0].mxu0 %v1424
      %v1478 = vpop.f32.mrb[0].mxu0
      %v1479 = vadd.f32 0.0, %v1478
      %v1480 = vpop.f32.mrb[0].mxu0
      %v1481 = vpop.f32.mrb[0].mxu0
      %v1482 = vadd.f32 0.0, %v1481
      %v1483 = vpop.f32.mrb[0].mxu0
      %1484 = vmatprep.mubr.bf16.mxu0 0
      %1485 = vmatmul.mubr.bf16.gmra.mrb[0].mxu0 %v1427
      %v1486 = vpop.f32.mrb[0].mxu0
      %v1487 = vadd.f32 0.0, %v1486
      %v1488 = vpop.f32.mrb[0].mxu0
      %v1489 = vpop.f32.mrb[0].mxu0
      %v1490 = vadd.f32 0.0, %v1489
      %v1491 = vpop.f32.mrb[0].mxu0
      %1492 = vmatprep.mubr.bf16.mxu0 0
      %1493 = vmatmul.mubr.bf16.gmra.mrb[0].mxu0 %v1430
      %v1494 = vpop.f32.mrb[0].mxu0
      %v1495 = vadd.f32 0.0, %v1494
      %v1496 = vpop.f32.mrb[0].mxu0
      %v1497 = vpop.f32.mrb[0].mxu0
      %v1498 = vadd.f32 0.0, %v1497
      %v1499 = vpop.f32.mrb[0].mxu0
      %1500 = vdwg.mxu0
      %v1501 = vmul.f32 %v1471, %v1211
      %v1502 = vmul.f32 %v1474, %v1215
      %v1503 = vmul.f32 %v1479, %v1219
      %v1504 = vmul.f32 %v1482, %v1223
      %v1505 = vmul.f32 %v1487, %v1227
      %v1506 = vmul.f32 %v1490, %v1231
      %v1507 = vmul.f32 %v1495, %v1235
      %v1508 = vmul.f32 %v1498, %v1239
      %v1509 = vadd.f32 %v1501, %v1502
      %v1510 = vadd.f32 %v1509, %v1503
      %v1511 = vadd.f32 %v1510, %v1504
      %v1512 = vadd.f32 %v1511, %v1505
      %v1513 = vadd.f32 %v1512, %v1506
      %v1514 = vadd.f32 %v1513, %v1507
      %v1515 = vadd.f32 %v1514, %v1508
      %v1516 = vpack.c.bf16 %v1515, %v1515
      %v1517 = vld [vmem:[%s12] sm:$0xf]
      %v1518 = vld [vmem:[%s12 + $0x4] sm:$0xf]
      %v1519 = vld [vmem:[%s12 + $0x8] sm:$0xf]
      %v1520 = vld [vmem:[%s12 + $0xc] sm:$0xf]
      %v1521 = vld [vmem:[%s12 + $0x10] sm:$0xf]
      %v1522 = vld [vmem:[%s12 + $0x14] sm:$0xf]
      %v1523 = vld [vmem:[%s12 + $0x18] sm:$0xf]
      %v1524 = vld [vmem:[%s12 + $0x1c] sm:$0xf]
      %v1525 = vld [vmem:[%s12 + $0x20] sm:$0xf]
      %v1526 = vld [vmem:[%s12 + $0x24] sm:$0xf]
      %v1527 = vld [vmem:[%s12 + $0x28] sm:$0xf]
      %v1528 = vld [vmem:[%s12 + $0x2c] sm:$0xf]
      %v1529 = vld [vmem:[%s12 + $0x30] sm:$0xf]
      %v1530 = vld [vmem:[%s12 + $0x34] sm:$0xf]
      %v1531 = vld [vmem:[%s12 + $0x38] sm:$0xf]
      %v1532 = vld [vmem:[%s12 + $0x3c] sm:$0xf]
      %v1549 = vunpack.c.l.b16 %v1517
      %v1550 = vunpack.c.l.b16 %v1518
      %v1551 = vunpack.c.l.b16 %v1519
      %v1552 = vunpack.c.l.b16 %v1520
      %v1553 = vunpack.c.l.b16 %v1521
      %v1554 = vunpack.c.l.b16 %v1522
      %v1555 = vunpack.c.l.b16 %v1523
      %v1556 = vunpack.c.l.b16 %v1524
      %v1557 = vunpack.c.l.b16 %v1525
      %v1558 = vunpack.c.l.b16 %v1526
      %v1559 = vunpack.c.l.b16 %v1527
      %v1560 = vunpack.c.l.b16 %v1528
      %v1561 = vunpack.c.l.b16 %v1529
      %v1562 = vunpack.c.l.b16 %v1530
      %v1563 = vunpack.c.l.b16 %v1531
      %v1564 = vunpack.c.l.b16 %v1532
      %v1565 = vpack.c.b16 %v1550, %v1549
      %v1566 = vpack.c.b16 %v1552, %v1551
      %v1567 = vpack.c.b16 %v1554, %v1553
      %v1568 = vpack.c.b16 %v1556, %v1555
      %v1569 = vpack.c.b16 %v1558, %v1557
      %v1570 = vpack.c.b16 %v1560, %v1559
      %v1571 = vpack.c.b16 %v1562, %v1561
      %v1572 = vpack.c.b16 %v1564, %v1563
      %1581 = vmatprep.subr.bf16.mxu0 0
      %1582 = vmatpush1.bf16.msra.mxu0 %v1565
      %1583 = vmatprep.subr.bf16.mxu0 0
      %1584 = vmatpush1.bf16.msra.mxu0 %v1566
      %1585 = vmatprep.subr.bf16.mxu0 0
      %1586 = vmatpush1.bf16.msra.mxu0 %v1567
      %1587 = vmatprep.subr.bf16.mxu0 0
      %1588 = vmatpush1.bf16.msra.mxu0 %v1568
      %1589 = vmatprep.subr.bf16.mxu0 0
      %1590 = vmatpush1.bf16.msra.mxu0 %v1569
      %1591 = vmatprep.subr.bf16.mxu0 0
      %1592 = vmatpush1.bf16.msra.mxu0 %v1570
      %1593 = vmatprep.subr.bf16.mxu0 0
      %1594 = vmatpush1.bf16.msra.mxu0 %v1571
      %1595 = vmatprep.subr.bf16.mxu0 0
      %1596 = vmatpush1.bf16.msra.mxu0 %v1572
      %1597 = vmatprep.subr.bf16.mxu0 0
      %1598 = vmatpush1.bf16.msra.mxu0 0
      %1599 = vmatprep.subr.bf16.mxu0 0
      %1600 = vmatpush1.bf16.msra.mxu0 0
      %1601 = vmatprep.subr.bf16.mxu0 0
      %1602 = vmatpush1.bf16.msra.mxu0 0
      %1603 = vmatprep.subr.bf16.mxu0 0
      %1604 = vmatpush1.bf16.msra.mxu0 0
      %1605 = vmatprep.subr.bf16.mxu0 0
      %1606 = vmatpush1.bf16.msra.mxu0 0
      %1607 = vmatprep.subr.bf16.mxu0 0
      %1608 = vmatpush1.bf16.msra.mxu0 0
      %1609 = vmatprep.subr.bf16.mxu0 0
      %1610 = vmatpush1.bf16.msra.mxu0 0
      %1611 = vmatprep.subr.bf16.mxu0 0
      %1612 = vmatpush1.bf16.msra.mxu0 0
      %1613 = vmatprep.mubr.bf16.mxu0 0
      %1614 = vmatmul.mubr.bf16.gmra.mrb[0].mxu0 %v1516
      %v1615 = vpop.f32.mrb[0].mxu0
      %v1616 = vadd.f32 0.0, %v1615
      %v1617 = vpop.f32.mrb[0].mxu0
      %v1618 = vpop.f32.mrb[0].mxu0
      %v1619 = vpop.f32.mrb[0].mxu0
      %1620 = vdwg.mxu0
      %v1621 = vadd.f32 %v653, %v1616
      %v1622 = vld [vmem:[%s13] sm:$0x1]
      %v1624 = vlaneseq
      %v1625 = vshrl.u32 %v1624, 7
      %v1626 = vsub.s32 0, %v1625
      %v1627 = vrot.slane %v1622, %v1626
      %v1629 = vadd.f32 %v1621, %v1627
      %v1630 = vld [vmem:[%s14] sm:$0x1]
      %v1631 = vmul.f32 %v1629, %v1629
      %1632 = vadd.xlane.f32.xlu0 %v1631
      %v1633 = vpop.xlane.xlu0 %1632
      %v1634 = vmul.f32 %v1633, 0.03125
      %v1635 = vadd.f32 %v1634, 1e-16
      %v1636 = vrsqrt.pop %v1635
      %v1637 = vmul.f32 %v1629, %v1636
      %v1639 = vlaneseq
      %v1640 = vshrl.u32 %v1639, 7
      %v1641 = vsub.s32 0, %v1640
      %v1642 = vrot.slane %v1630, %v1641
      %v1644 = vmul.f32 %v1637, %v1642
      %v1645 = vpack.c.bf16 %v1644, %v1644
      %v1646 = vld [vmem:[%s15] sm:$0xf]
      %v1647 = vld [vmem:[%s15 + $0x4] sm:$0xf]
      %v1648 = vld [vmem:[%s15 + $0x8] sm:$0xf]
      %v1649 = vld [vmem:[%s15 + $0xc] sm:$0xf]
      %v1650 = vld [vmem:[%s15 + $0x10] sm:$0xf]
      %v1651 = vld [vmem:[%s15 + $0x14] sm:$0xf]
      %v1652 = vld [vmem:[%s15 + $0x18] sm:$0xf]
      %v1653 = vld [vmem:[%s15 + $0x1c] sm:$0xf]
      %v1654 = vld [vmem:[%s15 + $0x20] sm:$0xf]
      %v1655 = vld [vmem:[%s15 + $0x24] sm:$0xf]
      %v1656 = vld [vmem:[%s15 + $0x28] sm:$0xf]
      %v1657 = vld [vmem:[%s15 + $0x2c] sm:$0xf]
      %v1658 = vld [vmem:[%s15 + $0x30] sm:$0xf]
      %v1659 = vld [vmem:[%s15 + $0x34] sm:$0xf]
      %v1660 = vld [vmem:[%s15 + $0x38] sm:$0xf]
      %v1661 = vld [vmem:[%s15 + $0x3c] sm:$0xf]
      %v1662 = vld [vmem:[%s16] sm:$0x1]
      %v1664 = vlaneseq
      %v1665 = vshrl.u32 %v1664, 7
      %v1666 = vsub.s32 0, %v1665
      %v1667 = vrot.slane %v1662, %v1666
      %v1685 = vunpack.c.l.b16 %v1646
      %v1686 = vunpack.c.l.b16 %v1647
      %v1687 = vunpack.c.l.b16 %v1648
      %v1688 = vunpack.c.l.b16 %v1649
      %v1689 = vunpack.c.l.b16 %v1650
      %v1690 = vunpack.c.l.b16 %v1651
      %v1691 = vunpack.c.l.b16 %v1652
      %v1692 = vunpack.c.l.b16 %v1653
      %v1693 = vunpack.c.l.b16 %v1654
      %v1694 = vunpack.c.l.b16 %v1655
      %v1695 = vunpack.c.l.b16 %v1656
      %v1696 = vunpack.c.l.b16 %v1657
      %v1697 = vunpack.c.l.b16 %v1658
      %v1698 = vunpack.c.l.b16 %v1659
      %v1699 = vunpack.c.l.b16 %v1660
      %v1700 = vunpack.c.l.b16 %v1661
      %v1701 = vpack.c.b16 %v1686, %v1685
      %v1702 = vpack.c.b16 %v1688, %v1687
      %v1703 = vpack.c.b16 %v1690, %v1689
      %v1704 = vpack.c.b16 %v1692, %v1691
      %v1705 = vpack.c.b16 %v1694, %v1693
      %v1706 = vpack.c.b16 %v1696, %v1695
      %v1707 = vpack.c.b16 %v1698, %v1697
      %v1708 = vpack.c.b16 %v1700, %v1699
      %1717 = vmatprep.subr.bf16.mxu0 0
      %1718 = vmatpush1.bf16.msra.mxu0 %v1701
      %1719 = vmatprep.subr.bf16.mxu0 0
      %1720 = vmatpush1.bf16.msra.mxu0 %v1702
      %1721 = vmatprep.subr.bf16.mxu0 0
      %1722 = vmatpush1.bf16.msra.mxu0 %v1703
      %1723 = vmatprep.subr.bf16.mxu0 0
      %1724 = vmatpush1.bf16.msra.mxu0 %v1704
      %1725 = vmatprep.subr.bf16.mxu0 0
      %1726 = vmatpush1.bf16.msra.mxu0 %v1705
      %1727 = vmatprep.subr.bf16.mxu0 0
      %1728 = vmatpush1.bf16.msra.mxu0 %v1706
      %1729 = vmatprep.subr.bf16.mxu0 0
      %1730 = vmatpush1.bf16.msra.mxu0 %v1707
      %1731 = vmatprep.subr.bf16.mxu0 0
      %1732 = vmatpush1.bf16.msra.mxu0 %v1708
      %1733 = vmatprep.subr.bf16.mxu0 0
      %1734 = vmatpush1.bf16.msra.mxu0 0
      %1735 = vmatprep.subr.bf16.mxu0 0
      %1736 = vmatpush1.bf16.msra.mxu0 0
      %1737 = vmatprep.subr.bf16.mxu0 0
      %1738 = vmatpush1.bf16.msra.mxu0 0
      %1739 = vmatprep.subr.bf16.mxu0 0
      %1740 = vmatpush1.bf16.msra.mxu0 0
      %1741 = vmatprep.subr.bf16.mxu0 0
      %1742 = vmatpush1.bf16.msra.mxu0 0
      %1743 = vmatprep.subr.bf16.mxu0 0
      %1744 = vmatpush1.bf16.msra.mxu0 0
      %1745 = vmatprep.subr.bf16.mxu0 0
      %1746 = vmatpush1.bf16.msra.mxu0 0
      %1747 = vmatprep.subr.bf16.mxu0 0
      %1748 = vmatpush1.bf16.msra.mxu0 0
      %1749 = vmatprep.mubr.bf16.mxu0 0
      %1750 = vmatmul.mubr.bf16.gmra.mrb[0].mxu0 %v1645
      %v1751 = vpop.f32.mrb[0].mxu0
      %v1752 = vadd.f32 %v1667, %v1751
      %v1753 = vpop.f32.mrb[0].mxu0
      %v1754 = vpop.f32.mrb[0].mxu0
      %v1755 = vpop.f32.mrb[0].mxu0
      %1756 = vdwg.mxu0
      %v1757 = vld [vmem:[%s17] sm:$0xf]
      %v1758 = vld [vmem:[%s17 + $0x4] sm:$0xf]
      %v1759 = vld [vmem:[%s17 + $0x8] sm:$0xf]
      %v1760 = vld [vmem:[%s17 + $0xc] sm:$0xf]
      %v1761 = vld [vmem:[%s17 + $0x10] sm:$0xf]
      %v1762 = vld [vmem:[%s17 + $0x14] sm:$0xf]
      %v1763 = vld [vmem:[%s17 + $0x18] sm:$0xf]
      %v1764 = vld [vmem:[%s17 + $0x1c] sm:$0xf]
      %v1765 = vld [vmem:[%s17 + $0x20] sm:$0xf]
      %v1766 = vld [vmem:[%s17 + $0x24] sm:$0xf]
      %v1767 = vld [vmem:[%s17 + $0x28] sm:$0xf]
      %v1768 = vld [vmem:[%s17 + $0x2c] sm:$0xf]
      %v1769 = vld [vmem:[%s17 + $0x30] sm:$0xf]
      %v1770 = vld [vmem:[%s17 + $0x34] sm:$0xf]
      %v1771 = vld [vmem:[%s17 + $0x38] sm:$0xf]
      %v1772 = vld [vmem:[%s17 + $0x3c] sm:$0xf]
      %v1773 = vld [vmem:[%s18] sm:$0x1]
      %v1775 = vlaneseq
      %v1776 = vshrl.u32 %v1775, 7
      %v1777 = vsub.s32 0, %v1776
      %v1778 = vrot.slane %v1773, %v1777
      %v1796 = vunpack.c.l.b16 %v1757
      %v1797 = vunpack.c.l.b16 %v1758
      %v1798 = vunpack.c.l.b16 %v1759
      %v1799 = vunpack.c.l.b16 %v1760
      %v1800 = vunpack.c.l.b16 %v1761
      %v1801 = vunpack.c.l.b16 %v1762
      %v1802 = vunpack.c.l.b16 %v1763
      %v1803 = vunpack.c.l.b16 %v1764
      %v1804 = vunpack.c.l.b16 %v1765
      %v1805 = vunpack.c.l.b16 %v1766
      %v1806 = vunpack.c.l.b16 %v1767
      %v1807 = vunpack.c.l.b16 %v1768
      %v1808 = vunpack.c.l.b16 %v1769
      %v1809 = vunpack.c.l.b16 %v1770
      %v1810 = vunpack.c.l.b16 %v1771
      %v1811 = vunpack.c.l.b16 %v1772
      %v1812 = vpack.c.b16 %v1797, %v1796
      %v1813 = vpack.c.b16 %v1799, %v1798
      %v1814 = vpack.c.b16 %v1801, %v1800
      %v1815 = vpack.c.b16 %v1803, %v1802
      %v1816 = vpack.c.b16 %v1805, %v1804
      %v1817 = vpack.c.b16 %v1807, %v1806
      %v1818 = vpack.c.b16 %v1809, %v1808
      %v1819 = vpack.c.b16 %v1811, %v1810
      %1828 = vmatprep.subr.bf16.mxu0 0
      %1829 = vmatpush1.bf16.msra.mxu0 %v1812
      %1830 = vmatprep.subr.bf16.mxu0 0
      %1831 = vmatpush1.bf16.msra.mxu0 %v1813
      %1832 = vmatprep.subr.bf16.mxu0 0
      %1833 = vmatpush1.bf16.msra.mxu0 %v1814
      %1834 = vmatprep.subr.bf16.mxu0 0
      %1835 = vmatpush1.bf16.msra.mxu0 %v1815
      %1836 = vmatprep.subr.bf16.mxu0 0
      %1837 = vmatpush1.bf16.msra.mxu0 %v1816
      %1838 = vmatprep.subr.bf16.mxu0 0
      %1839 = vmatpush1.bf16.msra.mxu0 %v1817
      %1840 = vmatprep.subr.bf16.mxu0 0
      %1841 = vmatpush1.bf16.msra.mxu0 %v1818
      %1842 = vmatprep.subr.bf16.mxu0 0
      %1843 = vmatpush1.bf16.msra.mxu0 %v1819
      %1844 = vmatprep.subr.bf16.mxu0 0
      %1845 = vmatpush1.bf16.msra.mxu0 0
      %1846 = vmatprep.subr.bf16.mxu0 0
      %1847 = vmatpush1.bf16.msra.mxu0 0
      %1848 = vmatprep.subr.bf16.mxu0 0
      %1849 = vmatpush1.bf16.msra.mxu0 0
      %1850 = vmatprep.subr.bf16.mxu0 0
      %1851 = vmatpush1.bf16.msra.mxu0 0
      %1852 = vmatprep.subr.bf16.mxu0 0
      %1853 = vmatpush1.bf16.msra.mxu0 0
      %1854 = vmatprep.subr.bf16.mxu0 0
      %1855 = vmatpush1.bf16.msra.mxu0 0
      %1856 = vmatprep.subr.bf16.mxu0 0
      %1857 = vmatpush1.bf16.msra.mxu0 0
      %1858 = vmatprep.subr.bf16.mxu0 0
      %1859 = vmatpush1.bf16.msra.mxu0 0
      %1860 = vmatprep.mubr.bf16.mxu0 0
      %1861 = vmatmul.mubr.bf16.gmra.mrb[0].mxu0 %v1645
      %v1862 = vpop.f32.mrb[0].mxu0
      %v1863 = vadd.f32 %v1778, %v1862
      %v1864 = vpop.f32.mrb[0].mxu0
      %v1865 = vpop.f32.mrb[0].mxu0
      %v1866 = vpop.f32.mrb[0].mxu0
      %1867 = vdwg.mxu0
      %v1868 = vsub.f32 0.0, %v1752
      %v1869 = vmul.f32 %v1868, 1.442695
      %v1870 = vpow.pop %v1869
      %v1871 = vadd.f32 %v1870, 1.0
      %v1872 = vrcp.pop %v1871
      %v1873 = vmul.f32 %v1752, %v1872
      %v1874 = vmul.f32 %v1873, %v1863
      %v1875 = vpack.c.bf16 %v1874, %v1874
      %v1876 = vld [vmem:[%s19] sm:$0xf]
      %v1877 = vld [vmem:[%s19 + $0x4] sm:$0xf]
      %v1878 = vld [vmem:[%s19 + $0x8] sm:$0xf]
      %v1879 = vld [vmem:[%s19 + $0xc] sm:$0xf]
      %v1880 = vld [vmem:[%s19 + $0x10] sm:$0xf]
      %v1881 = vld [vmem:[%s19 + $0x14] sm:$0xf]
      %v1882 = vld [vmem:[%s19 + $0x18] sm:$0xf]
      %v1883 = vld [vmem:[%s19 + $0x1c] sm:$0xf]
      %v1884 = vld [vmem:[%s19 + $0x20] sm:$0xf]
      %v1885 = vld [vmem:[%s19 + $0x24] sm:$0xf]
      %v1886 = vld [vmem:[%s19 + $0x28] sm:$0xf]
      %v1887 = vld [vmem:[%s19 + $0x2c] sm:$0xf]
      %v1888 = vld [vmem:[%s19 + $0x30] sm:$0xf]
      %v1889 = vld [vmem:[%s19 + $0x34] sm:$0xf]
      %v1890 = vld [vmem:[%s19 + $0x38] sm:$0xf]
      %v1891 = vld [vmem:[%s19 + $0x3c] sm:$0xf]
      %v1908 = vunpack.c.l.b16 %v1876
      %v1909 = vunpack.c.l.b16 %v1877
      %v1910 = vunpack.c.l.b16 %v1878
      %v1911 = vunpack.c.l.b16 %v1879
      %v1912 = vunpack.c.l.b16 %v1880
      %v1913 = vunpack.c.l.b16 %v1881
      %v1914 = vunpack.c.l.b16 %v1882
      %v1915 = vunpack.c.l.b16 %v1883
      %v1916 = vunpack.c.l.b16 %v1884
      %v1917 = vunpack.c.l.b16 %v1885
      %v1918 = vunpack.c.l.b16 %v1886
      %v1919 = vunpack.c.l.b16 %v1887
      %v1920 = vunpack.c.l.b16 %v1888
      %v1921 = vunpack.c.l.b16 %v1889
      %v1922 = vunpack.c.l.b16 %v1890
      %v1923 = vunpack.c.l.b16 %v1891
      %v1924 = vpack.c.b16 %v1909, %v1908
      %v1925 = vpack.c.b16 %v1911, %v1910
      %v1926 = vpack.c.b16 %v1913, %v1912
      %v1927 = vpack.c.b16 %v1915, %v1914
      %v1928 = vpack.c.b16 %v1917, %v1916
      %v1929 = vpack.c.b16 %v1919, %v1918
      %v1930 = vpack.c.b16 %v1921, %v1920
      %v1931 = vpack.c.b16 %v1923, %v1922
      %1940 = vmatprep.subr.bf16.mxu0 0
      %1941 = vmatpush1.bf16.msra.mxu0 %v1924
      %1942 = vmatprep.subr.bf16.mxu0 0
      %1943 = vmatpush1.bf16.msra.mxu0 %v1925
      %1944 = vmatprep.subr.bf16.mxu0 0
      %1945 = vmatpush1.bf16.msra.mxu0 %v1926
      %1946 = vmatprep.subr.bf16.mxu0 0
      %1947 = vmatpush1.bf16.msra.mxu0 %v1927
      %1948 = vmatprep.subr.bf16.mxu0 0
      %1949 = vmatpush1.bf16.msra.mxu0 %v1928
      %1950 = vmatprep.subr.bf16.mxu0 0
      %1951 = vmatpush1.bf16.msra.mxu0 %v1929
      %1952 = vmatprep.subr.bf16.mxu0 0
      %1953 = vmatpush1.bf16.msra.mxu0 %v1930
      %1954 = vmatprep.subr.bf16.mxu0 0
      %1955 = vmatpush1.bf16.msra.mxu0 %v1931
      %1956 = vmatprep.subr.bf16.mxu0 0
      %1957 = vmatpush1.bf16.msra.mxu0 0
      %1958 = vmatprep.subr.bf16.mxu0 0
      %1959 = vmatpush1.bf16.msra.mxu0 0
      %1960 = vmatprep.subr.bf16.mxu0 0
      %1961 = vmatpush1.bf16.msra.mxu0 0
      %1962 = vmatprep.subr.bf16.mxu0 0
      %1963 = vmatpush1.bf16.msra.mxu0 0
      %1964 = vmatprep.subr.bf16.mxu0 0
      %1965 = vmatpush1.bf16.msra.mxu0 0
      %1966 = vmatprep.subr.bf16.mxu0 0
      %1967 = vmatpush1.bf16.msra.mxu0 0
      %1968 = vmatprep.subr.bf16.mxu0 0
      %1969 = vmatpush1.bf16.msra.mxu0 0
      %1970 = vmatprep.subr.bf16.mxu0 0
      %1971 = vmatpush1.bf16.msra.mxu0 0
      %1972 = vmatprep.mubr.bf16.mxu0 0
      %1973 = vmatmul.mubr.bf16.gmra.mrb[0].mxu0 %v1875
      %v1974 = vpop.f32.mrb[0].mxu0
      %v1975 = vadd.f32 0.0, %v1974
      %v1976 = vpop.f32.mrb[0].mxu0
      %v1977 = vpop.f32.mrb[0].mxu0
      %v1978 = vpop.f32.mrb[0].mxu0
      %1979 = vdwg.mxu0
      %v1980 = vadd.f32 %v1629, %v1975
      %v1981 = vld [vmem:[%s20] sm:$0x1]
      %v1983 = vlaneseq
      %v1984 = vshrl.u32 %v1983, 7
      %v1985 = vsub.s32 0, %v1984
      %v1986 = vrot.slane %v1981, %v1985
      %v1988 = vadd.f32 %v1980, %v1986
      %1989 = vst [vmem:[%s651] sm:$0xff] %v1988
      %p1990 = scmp.lt.s32.totalorder %s32, 1
      %s1991 = scalar_select %p1990, %s32, 1
      %s1992 = smul.addr %s1991, 8
      %s1993 = scalar_lea.vmem %s21, %s1992
      // Predicated region
      $region105: #{transformer_block.1} parent=103 // pred_check
        %p1994 = pneg %p496
      $region106: #{transformer_block.1} parent=103 // pred_check_branch
        %1996 = sbr.rel (%p1994) target = $region108
      $region107: #{transformer_block.1} parent=103 // pred_region
        _
      $region108: #{transformer_block.1} parent=103 // pred_fallthru
        _
    $region104: #{transformer_block.1} parent=5 // pred_fallthru
      _
    %p1997 = scmp.le.s32.totalorder 2, %s27
    // Predicated region
    $region109: #{transformer_block.1} parent=5 // pred_check
      %p1998 = pneg %p1997
    $region110: #{transformer_block.1} parent=5 // pred_check_branch
      %2000 = sbr.rel (%p1998) target = $region112
    $region111: #{transformer_block.1} parent=5 // pred_region
      %s2001 = ssub.s32 %s27, 2
      // Predicated region
      $region113: #{transformer_block.1} parent=111 // pred_check
        %p2002 = pneg %p502
      $region114: #{transformer_block.1} parent=111 // pred_check_branch
        %2004 = sbr.rel (%p2002) target = $region116
      $region115: #{transformer_block.1} parent=111 // pred_region
        %p2005 = scmp.lt.s32.totalorder %s33, 1
        %s2006 = scalar_select %p2005, %s33, 1
        %s2007 = smul.addr %s2006, 8
        %s2008 = scalar_lea.vmem %s21, %s2007
      $region116: #{transformer_block.1} parent=111 // pred_fallthru
        _
    $region112: #{transformer_block.1} parent=5 // pred_fallthru
      _
  $region6: #{transformer_block.1} parent=0 // loop_footer
    %s31 = sadd.s32 1, %s27
  $region7: #{transformer_block.1} parent=0 // loop_footer_branch
    %26 = sbr.rel target = $region3
  $region8: #{transformer_block.1} parent=0 // loop_exit
    _

</llo_original>
